<compile_context>
chip_gen: v6e
topology: v6e:2x2x1
jax: 0.10.0
libtpu: 0.0.40
codegen_flags: <defaults>
</compile_context>

<pallas_src>
import jax
import jax.numpy as jnp
from jax.experimental import pallas as pl
from jax.experimental.pallas import tpu as pltpu

# ----------------------------- model sizes ---------------------------------
BATCH = 2          # batch
SEQ = 8            # enc_len / seqlen
VOCAB = 50         # args['vocabularySize']
EMB = 32           # args['embeddingSize']
HIDDEN = 32        # args['hiddenSize']
CHARGENUM = 5      # args['chargenum']
CAPDIM = 50        # cap_Wij output dim
NUM_ROUTING = 3
M_PLUS, M_MINUS, LAMBDA_C = 0.9, 0.1, 0.5

# TODO(synk): the Encoder class is not provided in the reference source; we
# model it as a single-layer unidirectional nn.LSTM(embeddingSize, hiddenSize)
# returning all per-step hidden states (no pack_padded_sequence).


# ----------------------- fused LSTM + capsule kernel ------------------------
def _fused_kernel(emb_ref, wih_ref, whh_ref, bias_ref, wcap_ref,
                  mask_ref, onehot_ref, loss_ref, hs_ref):
    """Fused encoder LSTM + capsule routing + margin loss.

    emb_ref    : [S*B, E]  time-major flattened embeddings (row = t*B + b)
    wih_ref    : [E, 4H]   input->gates weights (PyTorch gate order i, f, g, o)
    whh_ref    : [H, 4H]   hidden->gates weights
    bias_ref   : [1, 4H]   b_ih + b_hh
    wcap_ref   : [H, P]    cap_Wij (bias-free linear)
    mask_ref   : [B, S]    sign(tokens)
    onehot_ref : [B, C]    one-hot labels
    loss_ref   : [1, 1]    scalar loss output
    hs_ref     : [B, S, H] VMEM scratch holding encoder outputs (batch-major,
                           written per step -> no transpose, no HBM round-trip)
    """
    B, S, H = hs_ref.shape
    C = onehot_ref.shape[1]

    # ----------------------------- LSTM ------------------------------------
    # Hoisted input projection: all timesteps in one MXU matmul.
    gx = (jnp.dot(emb_ref[...], wih_ref[...],
                  preferred_element_type=jnp.float32)
          + bias_ref[...])                                        # [S*B, 4H]
    whh = whh_ref[...]                                            # [H, 4H]

    h = jnp.zeros((B, H), jnp.float32)
    c = jnp.zeros((B, H), jnp.float32)
    for t in range(S):                                            # static unroll
        gates = gx[t * B:(t + 1) * B, :] + jnp.dot(
            h, whh, preferred_element_type=jnp.float32)           # [B, 4H]
        # Full-width EUP activations on the 128-lane gates vreg, then static
        # per-gate lane slices of the activated results (i, f, g, o order).
        sg = jax.nn.sigmoid(gates)
        tg = jnp.tanh(gates)
        i_g = sg[:, 0 * H:1 * H]
        f_g = sg[:, 1 * H:2 * H]
        g_g = tg[:, 2 * H:3 * H]
        o_g = sg[:, 3 * H:4 * H]
        c = f_g * c + i_g * g_g
        h = o_g * jnp.tanh(c)
        hs_ref[:, t:t + 1, :] = h[:, None, :]                     # batch-major store

    # ----------------------- capsule routing + loss -------------------------
    enc = hs_ref[...]                                             # [B, S, H]
    # Single dot_general contracting only H (no batch dims) == the flat
    # [B*S, H] @ [H, P] matmul.
    u = jnp.einsum('bsh,hp->bsp', enc, wcap_ref[...],
                   preferred_element_type=jnp.float32)            # [B, S, P]
    mask = mask_ref[...]                                          # [B, S]
    answer = onehot_ref[...]                                      # [B, C]

    b_logits = jnp.zeros((B, S, C), jnp.float32)
    v = jnp.zeros((B, C, CAPDIM), jnp.float32)
    for _ in range(NUM_ROUTING):                                  # static unroll
        # mask_softmax over the sequence dimension (no eps, matching reference)
        explog = jnp.exp(b_logits) * mask[:, :, None]             # [B, S, C]
        z = jnp.sum(explog, axis=1, keepdims=True)                # [B, 1, C]
        c_route = explog * pl.reciprocal(z, approx=True)          # [B, S, C]
        # capsule_s = einsum('bsc,bsn->bnc', uji, c)
        s = jnp.einsum('bsp,bsn->bnp', u, c_route,
                       preferred_element_type=jnp.float32)        # [B, C, P]
        # squash: v = |s| / (1 + |s|^2) * s
        s_sq = jnp.sum(s * s, axis=2, keepdims=True)              # [B, C, 1]
        s_norm = jnp.sqrt(s_sq)
        v = s * (s_norm * pl.reciprocal(1.0 + s_sq, approx=True)) # [B, C, P]
        # capsule_delta = einsum('bcp,bsp->bsc', v, uji); forward overwrites b
        b_logits = jnp.einsum('bnp,bsp->bsn', v, u,
                              preferred_element_type=jnp.float32)

    v_norm = jnp.sqrt(jnp.sum(v * v, axis=2))                     # [B, C]
    cap_pos = jnp.maximum(M_PLUS - v_norm, 0.0) ** 2
    cap_neg = jnp.maximum(v_norm - M_MINUS, 0.0) ** 2
    cap_loss = answer * cap_pos + LAMBDA_C * (1.0 - answer) * cap_neg   # [B, C]
    per_example = jnp.sum(cap_loss, axis=1, keepdims=True)        # [B, 1]
    loss_ref[...] = jnp.sum(per_example, axis=0, keepdims=True) * (1.0 / B)


def fused_lstm_capsule(emb_flat, w_ih, w_hh, bias, w_cap, mask, onehot):
    out = pl.pallas_call(
        _fused_kernel,
        out_shape=jax.ShapeDtypeStruct((1, 1), jnp.float32),
        in_specs=[pl.BlockSpec(memory_space=pltpu.MemorySpace.VMEM)] * 7,
        out_specs=pl.BlockSpec(memory_space=pltpu.MemorySpace.VMEM),
        scratch_shapes=[pltpu.VMEM((BATCH, SEQ, HIDDEN), jnp.float32)],
    )(emb_flat, w_ih, w_hh, bias, w_cap, mask, onehot)
    return out[0, 0]


# ----------------------------- full forward ---------------------------------
def init_params(key):
    ks = jax.random.split(key, 6)
    scale = 1.0 / jnp.sqrt(HIDDEN)
    return {
        'embedding': jax.random.normal(ks[0], (VOCAB, EMB), jnp.float32) * 0.1,
        'w_ih': jax.random.uniform(ks[1], (EMB, 4 * HIDDEN), jnp.float32,
                                   -scale, scale),
        'w_hh': jax.random.uniform(ks[2], (HIDDEN, 4 * HIDDEN), jnp.float32,
                                   -scale, scale),
        'bias': jax.random.uniform(ks[3], (1, 4 * HIDDEN), jnp.float32,
                                   -scale, scale),
        'w_cap': jax.random.normal(ks[4], (HIDDEN, CAPDIM), jnp.float32) * 0.1,
    }


@jax.jit
def lstm_capsule_forward(params, enc_input, labels):
    # Embedding gather directly in time-major order (transpose the int32
    # indices, not the gathered rows) and flatten to [S*B, E] so the kernel
    # hoists the whole input projection into one matmul.
    emb_tm = jnp.take(params['embedding'], jnp.transpose(enc_input), axis=0)  # [S, B, E]
    emb_flat = emb_tm.reshape(SEQ * BATCH, EMB).astype(jnp.float32)           # [S*B, E]
    mask = jnp.sign(enc_input).astype(jnp.float32)                            # [B, S]
    onehot = jax.nn.one_hot(labels, CHARGENUM, dtype=jnp.float32)             # [B, C]
    # TODO(synk): token ids / labels could be folded into the kernel via
    # PrefetchScalarGridSpec scalar prefetch; kept as fused XLA glue here.
    return fused_lstm_capsule(emb_flat, params['w_ih'], params['w_hh'],
                              params['bias'], params['w_cap'], mask, onehot)


# --------------------------------- main --------------------------------------
if __name__ == "__main__":
    key = jax.random.PRNGKey(0)
    pkey, tkey, lkey = jax.random.split(key, 3)

    params = init_params(pkey)

    # tokens in [1, VOCAB); zero out a couple of positions to exercise the mask
    enc_input = jax.random.randint(tkey, (BATCH, SEQ), 1, VOCAB, jnp.int32)
    enc_input = enc_input.at[0, -2:].set(0)
    labels = jax.random.randint(lkey, (BATCH,), 0, CHARGENUM, jnp.int32)

    loss = lstm_capsule_forward(params, enc_input, labels)
    jax.block_until_ready(loss)
    assert loss.shape == () and jnp.isfinite(loss)
    print("KERNEL_OK")
</pallas_src>

<mosaic_0001>
module attributes {stable_mosaic.version = 11 : i64} {
  func.func @_fused_kernel(%arg0: memref<16x32xf32, #tpu.memory_space<vmem>>, %arg1: memref<32x128xf32, #tpu.memory_space<vmem>>, %arg2: memref<32x128xf32, #tpu.memory_space<vmem>>, %arg3: memref<1x128xf32, #tpu.memory_space<vmem>>, %arg4: memref<32x50xf32, #tpu.memory_space<vmem>>, %arg5: memref<2x8xf32, #tpu.memory_space<vmem>>, %arg6: memref<2x5xf32, #tpu.memory_space<vmem>>, %arg7: memref<1x1xf32, #tpu.memory_space<vmem>>, %arg8: memref<2x8x32xf32, #tpu.memory_space<vmem>>) attributes {dimension_semantics = [], scalar_prefetch = 0 : i64, scratch_operands = 1 : i64, tpu.core_type = #tpu.core_type<tc>} {
    %c0 = arith.constant 0 : index
    %c0_0 = arith.constant 0 : index
    %0 = vector.load %arg0[%c0, %c0_0] : memref<16x32xf32, #tpu.memory_space<vmem>>, vector<16x32xf32>
    %c0_1 = arith.constant 0 : index
    %c0_2 = arith.constant 0 : index
    %1 = vector.load %arg1[%c0_1, %c0_2] : memref<32x128xf32, #tpu.memory_space<vmem>>, vector<32x128xf32>
    %cst = arith.constant dense<0.000000e+00> : vector<16x128xf32>
    %2 = tpu.matmul %0, %1, %cst {dimension_numbers = #tpu.dot_dimension_numbers<[1], [0], [0], [1], [0, 0, 1, 1], [], []>} : vector<16x32xf32>, vector<32x128xf32>, vector<16x128xf32> -> vector<16x128xf32>
    %c0_3 = arith.constant 0 : index
    %c0_4 = arith.constant 0 : index
    %3 = vector.load %arg3[%c0_3, %c0_4] : memref<1x128xf32, #tpu.memory_space<vmem>>, vector<1x128xf32>
    %4 = vector.broadcast %3 : vector<1x128xf32> to vector<16x128xf32>
    %5 = arith.addf %2, %4 : vector<16x128xf32>
    %c0_5 = arith.constant 0 : index
    %c0_6 = arith.constant 0 : index
    %6 = vector.load %arg2[%c0_5, %c0_6] : memref<32x128xf32, #tpu.memory_space<vmem>>, vector<32x128xf32>
    %cst_7 = arith.constant 0.000000e+00 : f32
    %7 = vector.broadcast %cst_7 : f32 to vector<2x32xf32>
    %cst_8 = arith.constant 0.000000e+00 : f32
    %8 = vector.broadcast %cst_8 : f32 to vector<2x32xf32>
    %9 = vector.extract_strided_slice %5 {offsets = [0, 0], sizes = [2, 128], strides = [1, 1]} : vector<16x128xf32> to vector<2x128xf32>
    %cst_9 = arith.constant dense<0.000000e+00> : vector<2x128xf32>
    %10 = tpu.matmul %7, %6, %cst_9 {dimension_numbers = #tpu.dot_dimension_numbers<[1], [0], [0], [1], [0, 0, 1, 1], [], []>} : vector<2x32xf32>, vector<32x128xf32>, vector<2x128xf32> -> vector<2x128xf32>
    %11 = arith.addf %9, %10 : vector<2x128xf32>
    %12 = arith.negf %11 : vector<2x128xf32>
    %13 = math.exp %12 : vector<2x128xf32>
    %cst_10 = arith.constant 1.000000e+00 : f32
    %14 = vector.broadcast %cst_10 : f32 to vector<2x128xf32>
    %15 = arith.addf %14, %13 : vector<2x128xf32>
    %16 = arith.divf %14, %15 : vector<2x128xf32>
    %17 = math.tanh %11 : vector<2x128xf32>
    %18 = vector.extract_strided_slice %16 {offsets = [0, 0], sizes = [2, 32], strides = [1, 1]} : vector<2x128xf32> to vector<2x32xf32>
    %19 = vector.extract_strided_slice %16 {offsets = [0, 32], sizes = [2, 32], strides = [1, 1]} : vector<2x128xf32> to vector<2x32xf32>
    %20 = vector.extract_strided_slice %17 {offsets = [0, 64], sizes = [2, 32], strides = [1, 1]} : vector<2x128xf32> to vector<2x32xf32>
    %21 = vector.extract_strided_slice %16 {offsets = [0, 96], sizes = [2, 32], strides = [1, 1]} : vector<2x128xf32> to vector<2x32xf32>
    %22 = arith.mulf %19, %8 : vector<2x32xf32>
    %23 = arith.mulf %18, %20 : vector<2x32xf32>
    %24 = arith.addf %22, %23 : vector<2x32xf32>
    %25 = math.tanh %24 : vector<2x32xf32>
    %26 = arith.mulf %21, %25 : vector<2x32xf32>
    %27 = vector.shape_cast %26 : vector<2x32xf32> to vector<2x1x32xf32>
    %c0_11 = arith.constant 0 : index
    %c0_12 = arith.constant 0 : index
    %c0_13 = arith.constant 0 : index
    %28 = vector.load %arg8[%c0_11, %c0_12, %c0_13] : memref<2x8x32xf32, #tpu.memory_space<vmem>>, vector<2x1x32xf32>
    tpu.vector_store %arg8[%c0_11, %c0_12, %c0_13], %27 {strides = array<i32>} : memref<2x8x32xf32, #tpu.memory_space<vmem>>, vector<2x1x32xf32>,
    %29 = vector.extract_strided_slice %5 {offsets = [2, 0], sizes = [2, 128], strides = [1, 1]} : vector<16x128xf32> to vector<2x128xf32>
    %cst_14 = arith.constant dense<0.000000e+00> : vector<2x128xf32>
    %30 = tpu.matmul %26, %6, %cst_14 {dimension_numbers = #tpu.dot_dimension_numbers<[1], [0], [0], [1], [0, 0, 1, 1], [], []>} : vector<2x32xf32>, vector<32x128xf32>, vector<2x128xf32> -> vector<2x128xf32>
    %31 = arith.addf %29, %30 : vector<2x128xf32>
    %32 = arith.negf %31 : vector<2x128xf32>
    %33 = math.exp %32 : vector<2x128xf32>
    %cst_15 = arith.constant 1.000000e+00 : f32
    %34 = vector.broadcast %cst_15 : f32 to vector<2x128xf32>
    %35 = arith.addf %34, %33 : vector<2x128xf32>
    %36 = arith.divf %34, %35 : vector<2x128xf32>
    %37 = math.tanh %31 : vector<2x128xf32>
    %38 = vector.extract_strided_slice %36 {offsets = [0, 0], sizes = [2, 32], strides = [1, 1]} : vector<2x128xf32> to vector<2x32xf32>
    %39 = vector.extract_strided_slice %36 {offsets = [0, 32], sizes = [2, 32], strides = [1, 1]} : vector<2x128xf32> to vector<2x32xf32>
    %40 = vector.extract_strided_slice %37 {offsets = [0, 64], sizes = [2, 32], strides = [1, 1]} : vector<2x128xf32> to vector<2x32xf32>
    %41 = vector.extract_strided_slice %36 {offsets = [0, 96], sizes = [2, 32], strides = [1, 1]} : vector<2x128xf32> to vector<2x32xf32>
    %42 = arith.mulf %39, %24 : vector<2x32xf32>
    %43 = arith.mulf %38, %40 : vector<2x32xf32>
    %44 = arith.addf %42, %43 : vector<2x32xf32>
    %45 = math.tanh %44 : vector<2x32xf32>
    %46 = arith.mulf %41, %45 : vector<2x32xf32>
    %47 = vector.shape_cast %46 : vector<2x32xf32> to vector<2x1x32xf32>
    %c0_16 = arith.constant 0 : index
    %c1 = arith.constant 1 : index
    %c0_17 = arith.constant 0 : index
    %48 = vector.load %arg8[%c0_16, %c1, %c0_17] : memref<2x8x32xf32, #tpu.memory_space<vmem>>, vector<2x1x32xf32>
    tpu.vector_store %arg8[%c0_16, %c1, %c0_17], %47 {strides = array<i32>} : memref<2x8x32xf32, #tpu.memory_space<vmem>>, vector<2x1x32xf32>,
    %49 = vector.extract_strided_slice %5 {offsets = [4, 0], sizes = [2, 128], strides = [1, 1]} : vector<16x128xf32> to vector<2x128xf32>
    %cst_18 = arith.constant dense<0.000000e+00> : vector<2x128xf32>
    %50 = tpu.matmul %46, %6, %cst_18 {dimension_numbers = #tpu.dot_dimension_numbers<[1], [0], [0], [1], [0, 0, 1, 1], [], []>} : vector<2x32xf32>, vector<32x128xf32>, vector<2x128xf32> -> vector<2x128xf32>
    %51 = arith.addf %49, %50 : vector<2x128xf32>
    %52 = arith.negf %51 : vector<2x128xf32>
    %53 = math.exp %52 : vector<2x128xf32>
    %cst_19 = arith.constant 1.000000e+00 : f32
    %54 = vector.broadcast %cst_19 : f32 to vector<2x128xf32>
    %55 = arith.addf %54, %53 : vector<2x128xf32>
    %56 = arith.divf %54, %55 : vector<2x128xf32>
    %57 = math.tanh %51 : vector<2x128xf32>
    %58 = vector.extract_strided_slice %56 {offsets = [0, 0], sizes = [2, 32], strides = [1, 1]} : vector<2x128xf32> to vector<2x32xf32>
    %59 = vector.extract_strided_slice %56 {offsets = [0, 32], sizes = [2, 32], strides = [1, 1]} : vector<2x128xf32> to vector<2x32xf32>
    %60 = vector.extract_strided_slice %57 {offsets = [0, 64], sizes = [2, 32], strides = [1, 1]} : vector<2x128xf32> to vector<2x32xf32>
    %61 = vector.extract_strided_slice %56 {offsets = [0, 96], sizes = [2, 32], strides = [1, 1]} : vector<2x128xf32> to vector<2x32xf32>
    %62 = arith.mulf %59, %44 : vector<2x32xf32>
    %63 = arith.mulf %58, %60 : vector<2x32xf32>
    %64 = arith.addf %62, %63 : vector<2x32xf32>
    %65 = math.tanh %64 : vector<2x32xf32>
    %66 = arith.mulf %61, %65 : vector<2x32xf32>
    %67 = vector.shape_cast %66 : vector<2x32xf32> to vector<2x1x32xf32>
    %c0_20 = arith.constant 0 : index
    %c2 = arith.constant 2 : index
    %c0_21 = arith.constant 0 : index
    %68 = vector.load %arg8[%c0_20, %c2, %c0_21] : memref<2x8x32xf32, #tpu.memory_space<vmem>>, vector<2x1x32xf32>
    tpu.vector_store %arg8[%c0_20, %c2, %c0_21], %67 {strides = array<i32>} : memref<2x8x32xf32, #tpu.memory_space<vmem>>, vector<2x1x32xf32>,
    %69 = vector.extract_strided_slice %5 {offsets = [6, 0], sizes = [2, 128], strides = [1, 1]} : vector<16x128xf32> to vector<2x128xf32>
    %cst_22 = arith.constant dense<0.000000e+00> : vector<2x128xf32>
    %70 = tpu.matmul %66, %6, %cst_22 {dimension_numbers = #tpu.dot_dimension_numbers<[1], [0], [0], [1], [0, 0, 1, 1], [], []>} : vector<2x32xf32>, vector<32x128xf32>, vector<2x128xf32> -> vector<2x128xf32>
    %71 = arith.addf %69, %70 : vector<2x128xf32>
    %72 = arith.negf %71 : vector<2x128xf32>
    %73 = math.exp %72 : vector<2x128xf32>
    %cst_23 = arith.constant 1.000000e+00 : f32
    %74 = vector.broadcast %cst_23 : f32 to vector<2x128xf32>
    %75 = arith.addf %74, %73 : vector<2x128xf32>
    %76 = arith.divf %74, %75 : vector<2x128xf32>
    %77 = math.tanh %71 : vector<2x128xf32>
    %78 = vector.extract_strided_slice %76 {offsets = [0, 0], sizes = [2, 32], strides = [1, 1]} : vector<2x128xf32> to vector<2x32xf32>
    %79 = vector.extract_strided_slice %76 {offsets = [0, 32], sizes = [2, 32], strides = [1, 1]} : vector<2x128xf32> to vector<2x32xf32>
    %80 = vector.extract_strided_slice %77 {offsets = [0, 64], sizes = [2, 32], strides = [1, 1]} : vector<2x128xf32> to vector<2x32xf32>
    %81 = vector.extract_strided_slice %76 {offsets = [0, 96], sizes = [2, 32], strides = [1, 1]} : vector<2x128xf32> to vector<2x32xf32>
    %82 = arith.mulf %79, %64 : vector<2x32xf32>
    %83 = arith.mulf %78, %80 : vector<2x32xf32>
    %84 = arith.addf %82, %83 : vector<2x32xf32>
    %85 = math.tanh %84 : vector<2x32xf32>
    %86 = arith.mulf %81, %85 : vector<2x32xf32>
    %87 = vector.shape_cast %86 : vector<2x32xf32> to vector<2x1x32xf32>
    %c0_24 = arith.constant 0 : index
    %c3 = arith.constant 3 : index
    %c0_25 = arith.constant 0 : index
    %88 = vector.load %arg8[%c0_24, %c3, %c0_25] : memref<2x8x32xf32, #tpu.memory_space<vmem>>, vector<2x1x32xf32>
    tpu.vector_store %arg8[%c0_24, %c3, %c0_25], %87 {strides = array<i32>} : memref<2x8x32xf32, #tpu.memory_space<vmem>>, vector<2x1x32xf32>,
    %89 = vector.extract_strided_slice %5 {offsets = [8, 0], sizes = [2, 128], strides = [1, 1]} : vector<16x128xf32> to vector<2x128xf32>
    %cst_26 = arith.constant dense<0.000000e+00> : vector<2x128xf32>
    %90 = tpu.matmul %86, %6, %cst_26 {dimension_numbers = #tpu.dot_dimension_numbers<[1], [0], [0], [1], [0, 0, 1, 1], [], []>} : vector<2x32xf32>, vector<32x128xf32>, vector<2x128xf32> -> vector<2x128xf32>
    %91 = arith.addf %89, %90 : vector<2x128xf32>
    %92 = arith.negf %91 : vector<2x128xf32>
    %93 = math.exp %92 : vector<2x128xf32>
    %cst_27 = arith.constant 1.000000e+00 : f32
    %94 = vector.broadcast %cst_27 : f32 to vector<2x128xf32>
    %95 = arith.addf %94, %93 : vector<2x128xf32>
    %96 = arith.divf %94, %95 : vector<2x128xf32>
    %97 = math.tanh %91 : vector<2x128xf32>
    %98 = vector.extract_strided_slice %96 {offsets = [0, 0], sizes = [2, 32], strides = [1, 1]} : vector<2x128xf32> to vector<2x32xf32>
    %99 = vector.extract_strided_slice %96 {offsets = [0, 32], sizes = [2, 32], strides = [1, 1]} : vector<2x128xf32> to vector<2x32xf32>
    %100 = vector.extract_strided_slice %97 {offsets = [0, 64], sizes = [2, 32], strides = [1, 1]} : vector<2x128xf32> to vector<2x32xf32>
    %101 = vector.extract_strided_slice %96 {offsets = [0, 96], sizes = [2, 32], strides = [1, 1]} : vector<2x128xf32> to vector<2x32xf32>
    %102 = arith.mulf %99, %84 : vector<2x32xf32>
    %103 = arith.mulf %98, %100 : vector<2x32xf32>
    %104 = arith.addf %102, %103 : vector<2x32xf32>
    %105 = math.tanh %104 : vector<2x32xf32>
    %106 = arith.mulf %101, %105 : vector<2x32xf32>
    %107 = vector.shape_cast %106 : vector<2x32xf32> to vector<2x1x32xf32>
    %c0_28 = arith.constant 0 : index
    %c4 = arith.constant 4 : index
    %c0_29 = arith.constant 0 : index
    %108 = vector.load %arg8[%c0_28, %c4, %c0_29] : memref<2x8x32xf32, #tpu.memory_space<vmem>>, vector<2x1x32xf32>
    tpu.vector_store %arg8[%c0_28, %c4, %c0_29], %107 {strides = array<i32>} : memref<2x8x32xf32, #tpu.memory_space<vmem>>, vector<2x1x32xf32>,
    %109 = vector.extract_strided_slice %5 {offsets = [10, 0], sizes = [2, 128], strides = [1, 1]} : vector<16x128xf32> to vector<2x128xf32>
    %cst_30 = arith.constant dense<0.000000e+00> : vector<2x128xf32>
    %110 = tpu.matmul %106, %6, %cst_30 {dimension_numbers = #tpu.dot_dimension_numbers<[1], [0], [0], [1], [0, 0, 1, 1], [], []>} : vector<2x32xf32>, vector<32x128xf32>, vector<2x128xf32> -> vector<2x128xf32>
    %111 = arith.addf %109, %110 : vector<2x128xf32>
    %112 = arith.negf %111 : vector<2x128xf32>
    %113 = math.exp %112 : vector<2x128xf32>
    %cst_31 = arith.constant 1.000000e+00 : f32
    %114 = vector.broadcast %cst_31 : f32 to vector<2x128xf32>
    %115 = arith.addf %114, %113 : vector<2x128xf32>
    %116 = arith.divf %114, %115 : vector<2x128xf32>
    %117 = math.tanh %111 : vector<2x128xf32>
    %118 = vector.extract_strided_slice %116 {offsets = [0, 0], sizes = [2, 32], strides = [1, 1]} : vector<2x128xf32> to vector<2x32xf32>
    %119 = vector.extract_strided_slice %116 {offsets = [0, 32], sizes = [2, 32], strides = [1, 1]} : vector<2x128xf32> to vector<2x32xf32>
    %120 = vector.extract_strided_slice %117 {offsets = [0, 64], sizes = [2, 32], strides = [1, 1]} : vector<2x128xf32> to vector<2x32xf32>
    %121 = vector.extract_strided_slice %116 {offsets = [0, 96], sizes = [2, 32], strides = [1, 1]} : vector<2x128xf32> to vector<2x32xf32>
    %122 = arith.mulf %119, %104 : vector<2x32xf32>
    %123 = arith.mulf %118, %120 : vector<2x32xf32>
    %124 = arith.addf %122, %123 : vector<2x32xf32>
    %125 = math.tanh %124 : vector<2x32xf32>
    %126 = arith.mulf %121, %125 : vector<2x32xf32>
    %127 = vector.shape_cast %126 : vector<2x32xf32> to vector<2x1x32xf32>
    %c0_32 = arith.constant 0 : index
    %c5 = arith.constant 5 : index
    %c0_33 = arith.constant 0 : index
    %128 = vector.load %arg8[%c0_32, %c5, %c0_33] : memref<2x8x32xf32, #tpu.memory_space<vmem>>, vector<2x1x32xf32>
    tpu.vector_store %arg8[%c0_32, %c5, %c0_33], %127 {strides = array<i32>} : memref<2x8x32xf32, #tpu.memory_space<vmem>>, vector<2x1x32xf32>,
    %129 = vector.extract_strided_slice %5 {offsets = [12, 0], sizes = [2, 128], strides = [1, 1]} : vector<16x128xf32> to vector<2x128xf32>
    %cst_34 = arith.constant dense<0.000000e+00> : vector<2x128xf32>
    %130 = tpu.matmul %126, %6, %cst_34 {dimension_numbers = #tpu.dot_dimension_numbers<[1], [0], [0], [1], [0, 0, 1, 1], [], []>} : vector<2x32xf32>, vector<32x128xf32>, vector<2x128xf32> -> vector<2x128xf32>
    %131 = arith.addf %129, %130 : vector<2x128xf32>
    %132 = arith.negf %131 : vector<2x128xf32>
    %133 = math.exp %132 : vector<2x128xf32>
    %cst_35 = arith.constant 1.000000e+00 : f32
    %134 = vector.broadcast %cst_35 : f32 to vector<2x128xf32>
    %135 = arith.addf %134, %133 : vector<2x128xf32>
    %136 = arith.divf %134, %135 : vector<2x128xf32>
    %137 = math.tanh %131 : vector<2x128xf32>
    %138 = vector.extract_strided_slice %136 {offsets = [0, 0], sizes = [2, 32], strides = [1, 1]} : vector<2x128xf32> to vector<2x32xf32>
    %139 = vector.extract_strided_slice %136 {offsets = [0, 32], sizes = [2, 32], strides = [1, 1]} : vector<2x128xf32> to vector<2x32xf32>
    %140 = vector.extract_strided_slice %137 {offsets = [0, 64], sizes = [2, 32], strides = [1, 1]} : vector<2x128xf32> to vector<2x32xf32>
    %141 = vector.extract_strided_slice %136 {offsets = [0, 96], sizes = [2, 32], strides = [1, 1]} : vector<2x128xf32> to vector<2x32xf32>
    %142 = arith.mulf %139, %124 : vector<2x32xf32>
    %143 = arith.mulf %138, %140 : vector<2x32xf32>
    %144 = arith.addf %142, %143 : vector<2x32xf32>
    %145 = math.tanh %144 : vector<2x32xf32>
    %146 = arith.mulf %141, %145 : vector<2x32xf32>
    %147 = vector.shape_cast %146 : vector<2x32xf32> to vector<2x1x32xf32>
    %c0_36 = arith.constant 0 : index
    %c6 = arith.constant 6 : index
    %c0_37 = arith.constant 0 : index
    %148 = vector.load %arg8[%c0_36, %c6, %c0_37] : memref<2x8x32xf32, #tpu.memory_space<vmem>>, vector<2x1x32xf32>
    tpu.vector_store %arg8[%c0_36, %c6, %c0_37], %147 {strides = array<i32>} : memref<2x8x32xf32, #tpu.memory_space<vmem>>, vector<2x1x32xf32>,
    %149 = vector.extract_strided_slice %5 {offsets = [14, 0], sizes = [2, 128], strides = [1, 1]} : vector<16x128xf32> to vector<2x128xf32>
    %cst_38 = arith.constant dense<0.000000e+00> : vector<2x128xf32>
    %150 = tpu.matmul %146, %6, %cst_38 {dimension_numbers = #tpu.dot_dimension_numbers<[1], [0], [0], [1], [0, 0, 1, 1], [], []>} : vector<2x32xf32>, vector<32x128xf32>, vector<2x128xf32> -> vector<2x128xf32>
    %151 = arith.addf %149, %150 : vector<2x128xf32>
    %152 = arith.negf %151 : vector<2x128xf32>
    %153 = math.exp %152 : vector<2x128xf32>
    %cst_39 = arith.constant 1.000000e+00 : f32
    %154 = vector.broadcast %cst_39 : f32 to vector<2x128xf32>
    %155 = arith.addf %154, %153 : vector<2x128xf32>
    %156 = arith.divf %154, %155 : vector<2x128xf32>
    %157 = math.tanh %151 : vector<2x128xf32>
    %158 = vector.extract_strided_slice %156 {offsets = [0, 0], sizes = [2, 32], strides = [1, 1]} : vector<2x128xf32> to vector<2x32xf32>
    %159 = vector.extract_strided_slice %156 {offsets = [0, 32], sizes = [2, 32], strides = [1, 1]} : vector<2x128xf32> to vector<2x32xf32>
    %160 = vector.extract_strided_slice %157 {offsets = [0, 64], sizes = [2, 32], strides = [1, 1]} : vector<2x128xf32> to vector<2x32xf32>
    %161 = vector.extract_strided_slice %156 {offsets = [0, 96], sizes = [2, 32], strides = [1, 1]} : vector<2x128xf32> to vector<2x32xf32>
    %162 = arith.mulf %159, %144 : vector<2x32xf32>
    %163 = arith.mulf %158, %160 : vector<2x32xf32>
    %164 = arith.addf %162, %163 : vector<2x32xf32>
    %165 = math.tanh %164 : vector<2x32xf32>
    %166 = arith.mulf %161, %165 : vector<2x32xf32>
    %167 = vector.shape_cast %166 : vector<2x32xf32> to vector<2x1x32xf32>
    %c0_40 = arith.constant 0 : index
    %c7 = arith.constant 7 : index
    %c0_41 = arith.constant 0 : index
    %168 = vector.load %arg8[%c0_40, %c7, %c0_41] : memref<2x8x32xf32, #tpu.memory_space<vmem>>, vector<2x1x32xf32>
    tpu.vector_store %arg8[%c0_40, %c7, %c0_41], %167 {strides = array<i32>} : memref<2x8x32xf32, #tpu.memory_space<vmem>>, vector<2x1x32xf32>,
    %c0_42 = arith.constant 0 : index
    %c0_43 = arith.constant 0 : index
    %c0_44 = arith.constant 0 : index
    %169 = vector.load %arg8[%c0_42, %c0_43, %c0_44] : memref<2x8x32xf32, #tpu.memory_space<vmem>>, vector<2x8x32xf32>
    %c0_45 = arith.constant 0 : index
    %c0_46 = arith.constant 0 : index
    %170 = vector.load %arg4[%c0_45, %c0_46] : memref<32x50xf32, #tpu.memory_space<vmem>>, vector<32x50xf32>
    "tpu.trace_start"() <{level = 10 : i32, message = "bsh,hp->bsp"}> : () -> ()
    %cst_47 = arith.constant dense<0.000000e+00> : vector<2x8x50xf32>
    %171 = tpu.matmul %169, %170, %cst_47 {dimension_numbers = #tpu.dot_dimension_numbers<[2], [0], [0, 1], [1], [0, 0, 0, 1, 1, 1], [], []>} : vector<2x8x32xf32>, vector<32x50xf32>, vector<2x8x50xf32> -> vector<2x8x50xf32>
    "tpu.trace_stop"() : () -> ()
    %c0_48 = arith.constant 0 : index
    %c0_49 = arith.constant 0 : index
    %172 = vector.load %arg5[%c0_48, %c0_49] : memref<2x8xf32, #tpu.memory_space<vmem>>, vector<2x8xf32>
    %c0_50 = arith.constant 0 : index
    %c0_51 = arith.constant 0 : index
    %173 = vector.load %arg6[%c0_50, %c0_51] : memref<2x5xf32, #tpu.memory_space<vmem>>, vector<2x5xf32>
    %cst_52 = arith.constant 0.000000e+00 : f32
    %174 = vector.broadcast %cst_52 : f32 to vector<2x8x5xf32>
    %175 = math.exp %174 : vector<2x8x5xf32>
    %176 = vector.shape_cast %172 : vector<2x8xf32> to vector<2x8x1xf32>
    %177 = vector.broadcast %176 : vector<2x8x1xf32> to vector<2x8x5xf32>
    %178 = arith.mulf %175, %177 : vector<2x8x5xf32>
    %cst_53 = arith.constant dense<0.000000e+00> : vector<2x5xf32>
    %179 = vector.multi_reduction <add>, %178, %cst_53 [1] : vector<2x8x5xf32> to vector<2x5xf32>
    %180 = vector.shape_cast %179 : vector<2x5xf32> to vector<2x1x5xf32>
    %181 = tpu.reciprocal %180 {approx = true} : vector<2x1x5xf32> -> vector<2x1x5xf32>
    %182 = vector.broadcast %181 : vector<2x1x5xf32> to vector<2x8x5xf32>
    %183 = arith.mulf %178, %182 : vector<2x8x5xf32>
    "tpu.trace_start"() <{level = 10 : i32, message = "bsp,bsn->bnp"}> : () -> ()
    %cst_54 = arith.constant dense<0.000000e+00> : vector<2x5x50xf32>
    %184 = tpu.matmul %183, %171, %cst_54 {dimension_numbers = #tpu.dot_dimension_numbers<[1], [1], [2], [2], [0, 0, 0, 2, 1, 2], [0], [0]>} : vector<2x8x5xf32>, vector<2x8x50xf32>, vector<2x5x50xf32> -> vector<2x5x50xf32>
    "tpu.trace_stop"() : () -> ()
    %185 = arith.mulf %184, %184 : vector<2x5x50xf32>
    %cst_55 = arith.constant dense<0.000000e+00> : vector<2x5xf32>
    %186 = vector.multi_reduction <add>, %185, %cst_55 [2] : vector<2x5x50xf32> to vector<2x5xf32>
    %187 = vector.shape_cast %186 : vector<2x5xf32> to vector<2x5x1xf32>
    %188 = math.sqrt %187 : vector<2x5x1xf32>
    %cst_56 = arith.constant 1.000000e+00 : f32
    %189 = vector.broadcast %cst_56 : f32 to vector<2x5x1xf32>
    %190 = arith.addf %189, %187 : vector<2x5x1xf32>
    %191 = tpu.reciprocal %190 {approx = true} : vector<2x5x1xf32> -> vector<2x5x1xf32>
    %192 = arith.mulf %188, %191 : vector<2x5x1xf32>
    %193 = vector.broadcast %192 : vector<2x5x1xf32> to vector<2x5x50xf32>
    %194 = arith.mulf %184, %193 : vector<2x5x50xf32>
    "tpu.trace_start"() <{level = 10 : i32, message = "bnp,bsp->bsn"}> : () -> ()
    %cst_57 = arith.constant dense<0.000000e+00> : vector<2x8x5xf32>
    %195 = tpu.matmul %171, %194, %cst_57 {dimension_numbers = #tpu.dot_dimension_numbers<[2], [2], [1], [1], [0, 0, 0, 1, 1, 1], [0], [0]>} : vector<2x8x50xf32>, vector<2x5x50xf32>, vector<2x8x5xf32> -> vector<2x8x5xf32>
    "tpu.trace_stop"() : () -> ()
    %196 = math.exp %195 : vector<2x8x5xf32>
    %197 = vector.shape_cast %172 : vector<2x8xf32> to vector<2x8x1xf32>
    %198 = vector.broadcast %197 : vector<2x8x1xf32> to vector<2x8x5xf32>
    %199 = arith.mulf %196, %198 : vector<2x8x5xf32>
    %cst_58 = arith.constant dense<0.000000e+00> : vector<2x5xf32>
    %200 = vector.multi_reduction <add>, %199, %cst_58 [1] : vector<2x8x5xf32> to vector<2x5xf32>
    %201 = vector.shape_cast %200 : vector<2x5xf32> to vector<2x1x5xf32>
    %202 = tpu.reciprocal %201 {approx = true} : vector<2x1x5xf32> -> vector<2x1x5xf32>
    %203 = vector.broadcast %202 : vector<2x1x5xf32> to vector<2x8x5xf32>
    %204 = arith.mulf %199, %203 : vector<2x8x5xf32>
    "tpu.trace_start"() <{level = 10 : i32, message = "bsp,bsn->bnp"}> : () -> ()
    %cst_59 = arith.constant dense<0.000000e+00> : vector<2x5x50xf32>
    %205 = tpu.matmul %204, %171, %cst_59 {dimension_numbers = #tpu.dot_dimension_numbers<[1], [1], [2], [2], [0, 0, 0, 2, 1, 2], [0], [0]>} : vector<2x8x5xf32>, vector<2x8x50xf32>, vector<2x5x50xf32> -> vector<2x5x50xf32>
    "tpu.trace_stop"() : () -> ()
    %206 = arith.mulf %205, %205 : vector<2x5x50xf32>
    %cst_60 = arith.constant dense<0.000000e+00> : vector<2x5xf32>
    %207 = vector.multi_reduction <add>, %206, %cst_60 [2] : vector<2x5x50xf32> to vector<2x5xf32>
    %208 = vector.shape_cast %207 : vector<2x5xf32> to vector<2x5x1xf32>
    %209 = math.sqrt %208 : vector<2x5x1xf32>
    %cst_61 = arith.constant 1.000000e+00 : f32
    %210 = vector.broadcast %cst_61 : f32 to vector<2x5x1xf32>
    %211 = arith.addf %210, %208 : vector<2x5x1xf32>
    %212 = tpu.reciprocal %211 {approx = true} : vector<2x5x1xf32> -> vector<2x5x1xf32>
    %213 = arith.mulf %209, %212 : vector<2x5x1xf32>
    %214 = vector.broadcast %213 : vector<2x5x1xf32> to vector<2x5x50xf32>
    %215 = arith.mulf %205, %214 : vector<2x5x50xf32>
    "tpu.trace_start"() <{level = 10 : i32, message = "bnp,bsp->bsn"}> : () -> ()
    %cst_62 = arith.constant dense<0.000000e+00> : vector<2x8x5xf32>
    %216 = tpu.matmul %171, %215, %cst_62 {dimension_numbers = #tpu.dot_dimension_numbers<[2], [2], [1], [1], [0, 0, 0, 1, 1, 1], [0], [0]>} : vector<2x8x50xf32>, vector<2x5x50xf32>, vector<2x8x5xf32> -> vector<2x8x5xf32>
    "tpu.trace_stop"() : () -> ()
    %217 = math.exp %216 : vector<2x8x5xf32>
    %218 = vector.shape_cast %172 : vector<2x8xf32> to vector<2x8x1xf32>
    %219 = vector.broadcast %218 : vector<2x8x1xf32> to vector<2x8x5xf32>
    %220 = arith.mulf %217, %219 : vector<2x8x5xf32>
    %cst_63 = arith.constant dense<0.000000e+00> : vector<2x5xf32>
    %221 = vector.multi_reduction <add>, %220, %cst_63 [1] : vector<2x8x5xf32> to vector<2x5xf32>
    %222 = vector.shape_cast %221 : vector<2x5xf32> to vector<2x1x5xf32>
    %223 = tpu.reciprocal %222 {approx = true} : vector<2x1x5xf32> -> vector<2x1x5xf32>
    %224 = vector.broadcast %223 : vector<2x1x5xf32> to vector<2x8x5xf32>
    %225 = arith.mulf %220, %224 : vector<2x8x5xf32>
    "tpu.trace_start"() <{level = 10 : i32, message = "bsp,bsn->bnp"}> : () -> ()
    %cst_64 = arith.constant dense<0.000000e+00> : vector<2x5x50xf32>
    %226 = tpu.matmul %225, %171, %cst_64 {dimension_numbers = #tpu.dot_dimension_numbers<[1], [1], [2], [2], [0, 0, 0, 2, 1, 2], [0], [0]>} : vector<2x8x5xf32>, vector<2x8x50xf32>, vector<2x5x50xf32> -> vector<2x5x50xf32>
    "tpu.trace_stop"() : () -> ()
    %227 = arith.mulf %226, %226 : vector<2x5x50xf32>
    %cst_65 = arith.constant dense<0.000000e+00> : vector<2x5xf32>
    %228 = vector.multi_reduction <add>, %227, %cst_65 [2] : vector<2x5x50xf32> to vector<2x5xf32>
    %229 = vector.shape_cast %228 : vector<2x5xf32> to vector<2x5x1xf32>
    %230 = math.sqrt %229 : vector<2x5x1xf32>
    %cst_66 = arith.constant 1.000000e+00 : f32
    %231 = vector.broadcast %cst_66 : f32 to vector<2x5x1xf32>
    %232 = arith.addf %231, %229 : vector<2x5x1xf32>
    %233 = tpu.reciprocal %232 {approx = true} : vector<2x5x1xf32> -> vector<2x5x1xf32>
    %234 = arith.mulf %230, %233 : vector<2x5x1xf32>
    %235 = vector.broadcast %234 : vector<2x5x1xf32> to vector<2x5x50xf32>
    %236 = arith.mulf %226, %235 : vector<2x5x50xf32>
    %237 = arith.mulf %236, %236 : vector<2x5x50xf32>
    %cst_67 = arith.constant dense<0.000000e+00> : vector<2x5xf32>
    %238 = vector.multi_reduction <add>, %237, %cst_67 [2] : vector<2x5x50xf32> to vector<2x5xf32>
    %239 = math.sqrt %238 : vector<2x5xf32>
    %cst_68 = arith.constant 0.899999976 : f32
    %240 = vector.broadcast %cst_68 : f32 to vector<2x5xf32>
    %241 = arith.subf %240, %239 : vector<2x5xf32>
    %cst_69 = arith.constant 0.000000e+00 : f32
    %242 = vector.broadcast %cst_69 : f32 to vector<2x5xf32>
    %243 = arith.maximumf %241, %242 : vector<2x5xf32>
    %244 = arith.mulf %243, %243 : vector<2x5xf32>
    %cst_70 = arith.constant 1.000000e-01 : f32
    %245 = vector.broadcast %cst_70 : f32 to vector<2x5xf32>
    %246 = arith.subf %239, %245 : vector<2x5xf32>
    %cst_71 = arith.constant 0.000000e+00 : f32
    %247 = vector.broadcast %cst_71 : f32 to vector<2x5xf32>
    %248 = arith.maximumf %246, %247 : vector<2x5xf32>
    %249 = arith.mulf %248, %248 : vector<2x5xf32>
    %250 = arith.mulf %173, %244 : vector<2x5xf32>
    %cst_72 = arith.constant 1.000000e+00 : f32
    %251 = vector.broadcast %cst_72 : f32 to vector<2x5xf32>
    %252 = arith.subf %251, %173 : vector<2x5xf32>
    %cst_73 = arith.constant 5.000000e-01 : f32
    %253 = vector.broadcast %cst_73 : f32 to vector<2x5xf32>
    %254 = arith.mulf %253, %252 : vector<2x5xf32>
    %255 = arith.mulf %254, %249 : vector<2x5xf32>
    %256 = arith.addf %250, %255 : vector<2x5xf32>
    %cst_74 = arith.constant dense<0.000000e+00> : vector<2xf32>
    %257 = vector.multi_reduction <add>, %256, %cst_74 [1] : vector<2x5xf32> to vector<2xf32>
    %258 = vector.shape_cast %257 : vector<2xf32> to vector<2x1xf32>
    %cst_75 = arith.constant dense<0.000000e+00> : vector<1xf32>
    %259 = vector.multi_reduction <add>, %258, %cst_75 [0] : vector<2x1xf32> to vector<1xf32>
    %260 = vector.shape_cast %259 : vector<1xf32> to vector<1x1xf32>
    %cst_76 = arith.constant 5.000000e-01 : f32
    %261 = vector.broadcast %cst_76 : f32 to vector<1x1xf32>
    %262 = arith.mulf %260, %261 : vector<1x1xf32>
    %c0_77 = arith.constant 0 : index
    %c0_78 = arith.constant 0 : index
    %263 = vector.load %arg7[%c0_77, %c0_78] : memref<1x1xf32, #tpu.memory_space<vmem>>, vector<1x1xf32>
    tpu.vector_store %arg7[%c0_77, %c0_78], %262 {strides = array<i32>} : memref<1x1xf32, #tpu.memory_space<vmem>>, vector<1x1xf32>,
    return
  }
}

</mosaic_0001>

<llo_original>
// kernel: lstm_capsule_forward.1
$region0: #{lstm_capsule_forward.1}
  #allocation0 [shape = 'u32[]', space=smem, size = 0x4, offset = 0x4, fixed_abs, tag = 'smem constant byte address 0x4 - core index']
  #allocation1 [shape = 'u32[144,128]{1,0:T(1,128)}', space=vmem, size = 0x12000, scoped, tag = 'internal scratch']
  #allocation2 [shape = 'f32[2,8,32]{2,1,0:T(8,128)}', space=vmem, size = 0x2000, scoped, tag = 'scratch operand']
  %s0 = inlined_call_operand.vmem [shape: f32[16,32], index: 0, kind: input, shape index: {}]
  %s1 = inlined_call_operand.vmem [shape: f32[32,128], index: 1, kind: input, shape index: {}]
  %s2 = inlined_call_operand.vmem [shape: f32[32,128], index: 2, kind: input, shape index: {}]
  %s3 = inlined_call_operand.vmem [shape: f32[1,128], index: 3, kind: input, shape index: {}]
  %s4 = inlined_call_operand.vmem [shape: f32[32,50], index: 4, kind: input, shape index: {}]
  %s5 = inlined_call_operand.vmem [shape: f32[2,8], index: 5, kind: input, shape index: {}]
  %s6 = inlined_call_operand.vmem [shape: f32[2,5], index: 6, kind: input, shape index: {}]
  %s7 = inlined_call_operand.hbm [shape: f32[1,1], index: 7, kind: output, shape index: {}]
  %s8 = sld [smem:[#allocation0]]
  $region38: #{lstm_capsule_forward.1} parent=0
    _
  %s10 = ssub.s32 1, %s8
  %s11 = scalar_select 0, %s10, %s8
  $region1: #{lstm_capsule_forward.1} parent=0
    #allocation3 [shape = 'u8[512]{0}', space=vmem, size = 0x400, scoped, tag = 'output window, operand 0, single buffered']
    #allocation4 [shape = 's32[1]{0}', space=sflag, size = 0x4, scoped, tag = 'scoped memory for lstm_capsule_forward.1']
    %12 = vsyncpa [#allocation4], 0
    // Predicated region
    $region2: #{lstm_capsule_forward.1} parent=1 // pred_check
      _
    $region3: #{lstm_capsule_forward.1} parent=1 // pred_check_branch
      %14 = sbr.rel (0) target = $region5
    $region4: #{lstm_capsule_forward.1} parent=1 // pred_region
      _
    $region5: #{lstm_capsule_forward.1} parent=1 // pred_fallthru
      _
    // Predicated region
    $region6: #{lstm_capsule_forward.1} parent=1 // pred_check
      _
    $region7: #{lstm_capsule_forward.1} parent=1 // pred_check_branch
      %16 = sbr.rel (0) target = $region9
    $region8: #{lstm_capsule_forward.1} parent=1 // pred_region
      _
    $region9: #{lstm_capsule_forward.1} parent=1 // pred_fallthru
      _
    // Predicated region
    $region10: #{lstm_capsule_forward.1} parent=1 // pred_check
      _
    $region11: #{lstm_capsule_forward.1} parent=1 // pred_check_branch
      %18 = sbr.rel (0) target = $region13
    $region12: #{lstm_capsule_forward.1} parent=1 // pred_region
      _
    $region13: #{lstm_capsule_forward.1} parent=1 // pred_fallthru
      _
    // Predicated region
    $region14: #{lstm_capsule_forward.1} parent=1 // pred_check
      _
    $region15: #{lstm_capsule_forward.1} parent=1 // pred_check_branch
      %20 = sbr.rel (0) target = $region17
    $region16: #{lstm_capsule_forward.1} parent=1 // pred_region
      _
    $region17: #{lstm_capsule_forward.1} parent=1 // pred_fallthru
      _
    // Predicated region
    $region18: #{lstm_capsule_forward.1} parent=1 // pred_check
      _
    $region19: #{lstm_capsule_forward.1} parent=1 // pred_check_branch
      %22 = sbr.rel (0) target = $region21
    $region20: #{lstm_capsule_forward.1} parent=1 // pred_region
      _
    $region21: #{lstm_capsule_forward.1} parent=1 // pred_fallthru
      _
    // Predicated region
    $region22: #{lstm_capsule_forward.1} parent=1 // pred_check
      _
    $region23: #{lstm_capsule_forward.1} parent=1 // pred_check_branch
      %24 = sbr.rel (0) target = $region25
    $region24: #{lstm_capsule_forward.1} parent=1 // pred_region
      _
    $region25: #{lstm_capsule_forward.1} parent=1 // pred_fallthru
      _
    // Predicated region
    $region26: #{lstm_capsule_forward.1} parent=1 // pred_check
      _
    $region27: #{lstm_capsule_forward.1} parent=1 // pred_check_branch
      %26 = sbr.rel (0) target = $region29
    $region28: #{lstm_capsule_forward.1} parent=1 // pred_region
      _
    $region29: #{lstm_capsule_forward.1} parent=1 // pred_fallthru
      _
    %v27 = vld [vmem:[%s0] sm:$0xff]
    %v28 = vld [vmem:[%s0 + $0x8] sm:$0xff]
    %v29 = vld [vmem:[%s1] sm:$0xff]
    %v30 = vld [vmem:[%s1 + $0x8] sm:$0xff]
    %v31 = vld [vmem:[%s1 + $0x10] sm:$0xff]
    %v32 = vld [vmem:[%s1 + $0x18] sm:$0xff]
    %v33 = vld [vmem:[%s3] sm:$0x1]
    %v35 = vlaneseq
    %v36 = vshrl.u32 %v35, 7
    %v37 = vsub.s32 0, %v36
    %v38 = vrot.slane %v33, %v37
    %vm40 = vcmask 261120
    %v42 = vsel %vm40, %v27, 0
    %v45 = vsel %vm40, %v28, 0
    %47 = vmatprep.subr.mxu0 0.0
    %48 = vmatpush1.msra.mxu0 0.0
    %49 = vmatprep.subr.mxu0 0.0
    %50 = vmatpush1.msra.mxu0 0.0
    %51 = vmatprep.subr.mxu0 0.0
    %52 = vmatpush1.msra.mxu0 0.0
    %53 = vmatprep.subr.mxu0 0.0
    %54 = vmatpush1.msra.mxu0 0.0
    %55 = vmatprep.subr.mxu0 0.0
    %56 = vmatpush1.msra.mxu0 0.0
    %57 = vmatprep.subr.mxu0 0.0
    %58 = vmatpush1.msra.mxu0 0.0
    %59 = vmatprep.subr.mxu0 0.0
    %60 = vmatpush1.msra.mxu0 0.0
    %61 = vmatprep.subr.mxu0 0.0
    %62 = vmatpush1.msra.mxu0 0.0
    %63 = vmatprep.subr.mxu0 0.0
    %64 = vmatpush1.msra.mxu0 0.0
    %65 = vmatprep.subr.mxu0 0.0
    %66 = vmatpush1.msra.mxu0 0.0
    %67 = vmatprep.subr.mxu0 0.0
    %68 = vmatpush1.msra.mxu0 0.0
    %69 = vmatprep.subr.mxu0 0.0
    %70 = vmatpush1.msra.mxu0 0.0
    %71 = vmatprep.subr.mxu0 0.0
    %72 = vmatpush1.msra.mxu0 %v32
    %73 = vmatprep.subr.mxu0 0.0
    %74 = vmatpush1.msra.mxu0 %v31
    %75 = vmatprep.subr.mxu0 0.0
    %76 = vmatpush1.msra.mxu0 %v30
    %77 = vmatprep.subr.mxu0 0.0
    %78 = vmatpush1.msra.mxu0 %v29
    %79 = vmatprep.subr.mxu0 0.0
    %80 = vmatpush2.msra.mxu0 0.0
    %81 = vmatprep.subr.mxu0 0.0
    %82 = vmatpush2.msra.mxu0 0.0
    %83 = vmatprep.subr.mxu0 0.0
    %84 = vmatpush2.msra.mxu0 0.0
    %85 = vmatprep.subr.mxu0 0.0
    %86 = vmatpush2.msra.mxu0 0.0
    %87 = vmatprep.subr.mxu0 0.0
    %88 = vmatpush2.msra.mxu0 0.0
    %89 = vmatprep.subr.mxu0 0.0
    %90 = vmatpush2.msra.mxu0 0.0
    %91 = vmatprep.subr.mxu0 0.0
    %92 = vmatpush2.msra.mxu0 0.0
    %93 = vmatprep.subr.mxu0 0.0
    %94 = vmatpush2.msra.mxu0 0.0
    %95 = vmatprep.subr.mxu0 0.0
    %96 = vmatpush2.msra.mxu0 0.0
    %97 = vmatprep.subr.mxu0 0.0
    %98 = vmatpush2.msra.mxu0 0.0
    %99 = vmatprep.subr.mxu0 0.0
    %100 = vmatpush2.msra.mxu0 0.0
    %101 = vmatprep.subr.mxu0 0.0
    %102 = vmatpush2.msra.mxu0 0.0
    %103 = vmatprep.subr.mxu0 0.0
    %104 = vmatpush2.msra.mxu0 0.0
    %105 = vmatprep.subr.mxu0 0.0
    %106 = vmatpush2.msra.mxu0 0.0
    %107 = vmatprep.subr.mxu0 0.0
    %108 = vmatpush2.msra.mxu0 0.0
    %109 = vmatprep.subr.mxu0 0.0
    %110 = vmatpush2.msra.mxu0 0.0
    %111 = vmatprep.mubr.f32.mxu0 0.0
    %112 = vmatmul.mubr.f32.gmra.mxu0 %v42
    %v113 = vpop.f32.mrf.mxu0
    %v114 = vadd.f32 %v38, %v113
    %v115 = vpop.f32.mrf.mxu0
    %116 = vmatprep.mubr.f32.mxu0 0.0
    %117 = vmatmul.mubr.f32.gmra.mxu0 %v45
    %v118 = vpop.f32.mrf.mxu0
    %v119 = vadd.f32 %v38, %v118
    %v120 = vpop.f32.mrf.mxu0
    %121 = vdwg.mxu0
    %v122 = vld [vmem:[%s2] sm:$0xff]
    %v123 = vld [vmem:[%s2 + $0x8] sm:$0xff]
    %v124 = vld [vmem:[%s2 + $0x10] sm:$0xff]
    %v125 = vld [vmem:[%s2 + $0x18] sm:$0xff]
    %v127 = vsel %vm40, 0.0, 0
    %129 = vmatprep.subr.mxu0 0.0
    %130 = vmatpush1.msra.mxu0 0.0
    %131 = vmatprep.subr.mxu0 0.0
    %132 = vmatpush1.msra.mxu0 0.0
    %133 = vmatprep.subr.mxu0 0.0
    %134 = vmatpush1.msra.mxu0 0.0
    %135 = vmatprep.subr.mxu0 0.0
    %136 = vmatpush1.msra.mxu0 0.0
    %137 = vmatprep.subr.mxu0 0.0
    %138 = vmatpush1.msra.mxu0 0.0
    %139 = vmatprep.subr.mxu0 0.0
    %140 = vmatpush1.msra.mxu0 0.0
    %141 = vmatprep.subr.mxu0 0.0
    %142 = vmatpush1.msra.mxu0 0.0
    %143 = vmatprep.subr.mxu0 0.0
    %144 = vmatpush1.msra.mxu0 0.0
    %145 = vmatprep.subr.mxu0 0.0
    %146 = vmatpush1.msra.mxu0 0.0
    %147 = vmatprep.subr.mxu0 0.0
    %148 = vmatpush1.msra.mxu0 0.0
    %149 = vmatprep.subr.mxu0 0.0
    %150 = vmatpush1.msra.mxu0 0.0
    %151 = vmatprep.subr.mxu0 0.0
    %152 = vmatpush1.msra.mxu0 0.0
    %153 = vmatprep.subr.mxu0 0.0
    %154 = vmatpush1.msra.mxu0 %v125
    %155 = vmatprep.subr.mxu0 0.0
    %156 = vmatpush1.msra.mxu0 %v124
    %157 = vmatprep.subr.mxu0 0.0
    %158 = vmatpush1.msra.mxu0 %v123
    %159 = vmatprep.subr.mxu0 0.0
    %160 = vmatpush1.msra.mxu0 %v122
    %161 = vmatprep.subr.mxu0 0.0
    %162 = vmatpush2.msra.mxu0 0.0
    %163 = vmatprep.subr.mxu0 0.0
    %164 = vmatpush2.msra.mxu0 0.0
    %165 = vmatprep.subr.mxu0 0.0
    %166 = vmatpush2.msra.mxu0 0.0
    %167 = vmatprep.subr.mxu0 0.0
    %168 = vmatpush2.msra.mxu0 0.0
    %169 = vmatprep.subr.mxu0 0.0
    %170 = vmatpush2.msra.mxu0 0.0
    %171 = vmatprep.subr.mxu0 0.0
    %172 = vmatpush2.msra.mxu0 0.0
    %173 = vmatprep.subr.mxu0 0.0
    %174 = vmatpush2.msra.mxu0 0.0
    %175 = vmatprep.subr.mxu0 0.0
    %176 = vmatpush2.msra.mxu0 0.0
    %177 = vmatprep.subr.mxu0 0.0
    %178 = vmatpush2.msra.mxu0 0.0
    %179 = vmatprep.subr.mxu0 0.0
    %180 = vmatpush2.msra.mxu0 0.0
    %181 = vmatprep.subr.mxu0 0.0
    %182 = vmatpush2.msra.mxu0 0.0
    %183 = vmatprep.subr.mxu0 0.0
    %184 = vmatpush2.msra.mxu0 0.0
    %185 = vmatprep.subr.mxu0 0.0
    %186 = vmatpush2.msra.mxu0 0.0
    %187 = vmatprep.subr.mxu0 0.0
    %188 = vmatpush2.msra.mxu0 0.0
    %189 = vmatprep.subr.mxu0 0.0
    %190 = vmatpush2.msra.mxu0 0.0
    %191 = vmatprep.subr.mxu0 0.0
    %192 = vmatpush2.msra.mxu0 0.0
    %193 = vmatprep.mubr.f32.mxu0 0.0
    %194 = vmatmul.mubr.f32.gmra.mxu0 %v127
    %v195 = vpop.f32.mrf.mxu0
    %v196 = vadd.f32 0.0, %v195
    %v197 = vpop.f32.mrf.mxu0
    %198 = vdwg.mxu0
    %v199 = vadd.f32 %v114, %v196
    %v200 = vxor.u32 %v199, 2147483648
    %v201 = vmul.f32 %v200, 1.442695
    %v202 = vpow.pop %v201
    %v203 = vadd.f32 %v202, 1.0
    %v204 = vrcp.pop %v203
    %v205 = vmul.f32 1.0, %v204
    %v206 = vtanh.pop %v199
    %v207 = vmul.f32 %v205, 0.0
    %209 = vrot.lane.b32.xlu0 %v206, 64
    %v210 = vpop.permute.xlu0 %209
    %v212 = vmul.f32 %v205, %v210
    %214 = vrot.lane.b32.xlu0 %v212, 32
    %v215 = vpop.permute.xlu0 %214
    %v217 = vadd.f32 %v207, %v215
    %v218 = vtanh.pop %v217
    %220 = vrot.lane.b32.xlu0 %v218, 64
    %v221 = vpop.permute.xlu0 %220
    %v223 = vmul.f32 %v205, %v221
    %v226 = vunpack.c.l.s4 1966171168
    %v227 = vunpack.c.0.s8 %v226
    %v228 = vlaneseq
    %v229 = vshrl.u32 %v228, 7
    %v230 = vsub.s32 %v227, %v229
    %v231 = vrot.slane %v223, %v230
    %v232 = vcombine.high %v231, %v231
    %v234 = vunpack.c.l.s4 1966171168
    %v235 = vunpack.c.0.s8 %v234
    %v236 = vlaneseq
    %v237 = vshrl.u32 %v236, 7
    %v238 = vsub.s32 %v235, %v237
    %v239 = vrot.slane %v231, %v238
    %v241 = vunpack.c.l.s4 1966171168
    %v242 = vunpack.c.0.s8 %v241
    %v243 = vlaneseq
    %v244 = vshrl.u32 %v243, 7
    %v245 = vsub.s32 %v242, %v244
    %v246 = vrot.slane %v232, %v245
    %v247 = vlaneseq
    %v248 = vshrl.u32 %v247, 7
    %v249 = vsub.s32 0, %v248
    %v250 = vrot.slane %v239, %v249
    %v251 = vlaneseq
    %v252 = vshrl.u32 %v251, 7
    %v253 = vsub.s32 0, %v252
    %v254 = vrot.slane %v246, %v253
    %255 = vrot.lane.b32.xlu0 %v250, 32
    %v256 = vpop.permute.xlu0 %255
    %257 = vrot.lane.b32.xlu0 %v254, 32
    %v258 = vpop.permute.xlu0 %257
    %vm261 = vcmask 253952
    %262 = vst.msk [vmem:[#allocation2] sm:$0x1] %vm261, %v256
    %263 = vst.msk [vmem:[#allocation2 + $0x8] sm:$0x1] %vm261, %v258
    %264 = vrot.lane.b32.xlu0 %v223, 32
    %v265 = vpop.permute.xlu0 %264
    %v266 = vsel %vm40, %v265, 0
    %268 = vmatprep.subr.mxu0 0.0
    %269 = vmatpush1.msra.mxu0 0.0
    %270 = vmatprep.subr.mxu0 0.0
    %271 = vmatpush1.msra.mxu0 0.0
    %272 = vmatprep.subr.mxu0 0.0
    %273 = vmatpush1.msra.mxu0 0.0
    %274 = vmatprep.subr.mxu0 0.0
    %275 = vmatpush1.msra.mxu0 0.0
    %276 = vmatprep.subr.mxu0 0.0
    %277 = vmatpush1.msra.mxu0 0.0
    %278 = vmatprep.subr.mxu0 0.0
    %279 = vmatpush1.msra.mxu0 0.0
    %280 = vmatprep.subr.mxu0 0.0
    %281 = vmatpush1.msra.mxu0 0.0
    %282 = vmatprep.subr.mxu0 0.0
    %283 = vmatpush1.msra.mxu0 0.0
    %284 = vmatprep.subr.mxu0 0.0
    %285 = vmatpush1.msra.mxu0 0.0
    %286 = vmatprep.subr.mxu0 0.0
    %287 = vmatpush1.msra.mxu0 0.0
    %288 = vmatprep.subr.mxu0 0.0
    %289 = vmatpush1.msra.mxu0 0.0
    %290 = vmatprep.subr.mxu0 0.0
    %291 = vmatpush1.msra.mxu0 0.0
    %292 = vmatprep.subr.mxu0 0.0
    %293 = vmatpush1.msra.mxu0 %v125
    %294 = vmatprep.subr.mxu0 0.0
    %295 = vmatpush1.msra.mxu0 %v124
    %296 = vmatprep.subr.mxu0 0.0
    %297 = vmatpush1.msra.mxu0 %v123
    %298 = vmatprep.subr.mxu0 0.0
    %299 = vmatpush1.msra.mxu0 %v122
    %300 = vmatprep.subr.mxu0 0.0
    %301 = vmatpush2.msra.mxu0 0.0
    %302 = vmatprep.subr.mxu0 0.0
    %303 = vmatpush2.msra.mxu0 0.0
    %304 = vmatprep.subr.mxu0 0.0
    %305 = vmatpush2.msra.mxu0 0.0
    %306 = vmatprep.subr.mxu0 0.0
    %307 = vmatpush2.msra.mxu0 0.0
    %308 = vmatprep.subr.mxu0 0.0
    %309 = vmatpush2.msra.mxu0 0.0
    %310 = vmatprep.subr.mxu0 0.0
    %311 = vmatpush2.msra.mxu0 0.0
    %312 = vmatprep.subr.mxu0 0.0
    %313 = vmatpush2.msra.mxu0 0.0
    %314 = vmatprep.subr.mxu0 0.0
    %315 = vmatpush2.msra.mxu0 0.0
    %316 = vmatprep.subr.mxu0 0.0
    %317 = vmatpush2.msra.mxu0 0.0
    %318 = vmatprep.subr.mxu0 0.0
    %319 = vmatpush2.msra.mxu0 0.0
    %320 = vmatprep.subr.mxu0 0.0
    %321 = vmatpush2.msra.mxu0 0.0
    %322 = vmatprep.subr.mxu0 0.0
    %323 = vmatpush2.msra.mxu0 0.0
    %324 = vmatprep.subr.mxu0 0.0
    %325 = vmatpush2.msra.mxu0 0.0
    %326 = vmatprep.subr.mxu0 0.0
    %327 = vmatpush2.msra.mxu0 0.0
    %328 = vmatprep.subr.mxu0 0.0
    %329 = vmatpush2.msra.mxu0 0.0
    %330 = vmatprep.subr.mxu0 0.0
    %331 = vmatpush2.msra.mxu0 0.0
    %332 = vmatprep.mubr.f32.mxu0 0.0
    %333 = vmatmul.mubr.f32.gmra.mxu0 %v266
    %v334 = vpop.f32.mrf.mxu0
    %v335 = vadd.f32 0.0, %v334
    %v336 = vpop.f32.mrf.mxu0
    %337 = vdwg.mxu0
    %v339 = vrot.slane %v335, 6
    %v341 = vadd.f32 %v114, %v339
    %v342 = vxor.u32 %v341, 2147483648
    %v343 = vmul.f32 %v342, 1.442695
    %v344 = vpow.pop %v343
    %v345 = vadd.f32 %v344, 1.0
    %v346 = vrcp.pop %v345
    %v347 = vmul.f32 1.0, %v346
    %v348 = vtanh.pop %v341
    %v350 = vrot.slane %v217, 6
    %v352 = vmul.f32 %v347, %v350
    %354 = vrot.lane.b32.xlu0 %v348, 64
    %v355 = vpop.permute.xlu0 %354
    %v357 = vmul.f32 %v347, %v355
    %359 = vrot.lane.b32.xlu0 %v357, 32
    %v360 = vpop.permute.xlu0 %359
    %v362 = vadd.f32 %v352, %v360
    %v363 = vtanh.pop %v362
    %365 = vrot.lane.b32.xlu0 %v363, 64
    %v366 = vpop.permute.xlu0 %365
    %v368 = vmul.f32 %v347, %v366
    %v371 = vunpack.c.l.s4 1966171168
    %v372 = vunpack.c.0.s8 %v371
    %v373 = vlaneseq
    %v374 = vshrl.u32 %v373, 7
    %v375 = vsub.s32 %v372, %v374
    %v376 = vrot.slane %v368, %v375
    %v377 = vcombine.high %v376, %v376
    %v379 = vunpack.c.l.s4 1966171168
    %v380 = vunpack.c.0.s8 %v379
    %v381 = vlaneseq
    %v382 = vshrl.u32 %v381, 7
    %v383 = vsub.s32 %v380, %v382
    %v384 = vrot.slane %v376, %v383
    %v386 = vunpack.c.l.s4 1966171168
    %v387 = vunpack.c.0.s8 %v386
    %v388 = vlaneseq
    %v389 = vshrl.u32 %v388, 7
    %v390 = vsub.s32 %v387, %v389
    %v391 = vrot.slane %v377, %v390
    %v392 = vcombine.high %v384, %v384
    %v393 = vcombine.high %v391, %v391
    %v394 = vlaneseq
    %v395 = vshrl.u32 %v394, 7
    %v396 = vsub.s32 0, %v395
    %v397 = vrot.slane %v392, %v396
    %v398 = vlaneseq
    %v399 = vshrl.u32 %v398, 7
    %v400 = vsub.s32 0, %v399
    %v401 = vrot.slane %v393, %v400
    %402 = vrot.lane.b32.xlu0 %v397, 32
    %v403 = vpop.permute.xlu0 %402
    %404 = vrot.lane.b32.xlu0 %v401, 32
    %v405 = vpop.permute.xlu0 %404
    %408 = vst.msk [vmem:[#allocation2 + $0x1] sm:$0x1] %vm261, %v403
    %409 = vst.msk [vmem:[#allocation2 + $0x9] sm:$0x1] %vm261, %v405
    %v410 = vrot.slane %v368, 2
    %411 = vrot.lane.b32.xlu0 %v410, 32
    %v412 = vpop.permute.xlu0 %411
    %v413 = vsel %vm40, %v412, 0
    %415 = vmatprep.subr.mxu0 0.0
    %416 = vmatpush1.msra.mxu0 0.0
    %417 = vmatprep.subr.mxu0 0.0
    %418 = vmatpush1.msra.mxu0 0.0
    %419 = vmatprep.subr.mxu0 0.0
    %420 = vmatpush1.msra.mxu0 0.0
    %421 = vmatprep.subr.mxu0 0.0
    %422 = vmatpush1.msra.mxu0 0.0
    %423 = vmatprep.subr.mxu0 0.0
    %424 = vmatpush1.msra.mxu0 0.0
    %425 = vmatprep.subr.mxu0 0.0
    %426 = vmatpush1.msra.mxu0 0.0
    %427 = vmatprep.subr.mxu0 0.0
    %428 = vmatpush1.msra.mxu0 0.0
    %429 = vmatprep.subr.mxu0 0.0
    %430 = vmatpush1.msra.mxu0 0.0
    %431 = vmatprep.subr.mxu0 0.0
    %432 = vmatpush1.msra.mxu0 0.0
    %433 = vmatprep.subr.mxu0 0.0
    %434 = vmatpush1.msra.mxu0 0.0
    %435 = vmatprep.subr.mxu0 0.0
    %436 = vmatpush1.msra.mxu0 0.0
    %437 = vmatprep.subr.mxu0 0.0
    %438 = vmatpush1.msra.mxu0 0.0
    %439 = vmatprep.subr.mxu0 0.0
    %440 = vmatpush1.msra.mxu0 %v125
    %441 = vmatprep.subr.mxu0 0.0
    %442 = vmatpush1.msra.mxu0 %v124
    %443 = vmatprep.subr.mxu0 0.0
    %444 = vmatpush1.msra.mxu0 %v123
    %445 = vmatprep.subr.mxu0 0.0
    %446 = vmatpush1.msra.mxu0 %v122
    %447 = vmatprep.subr.mxu0 0.0
    %448 = vmatpush2.msra.mxu0 0.0
    %449 = vmatprep.subr.mxu0 0.0
    %450 = vmatpush2.msra.mxu0 0.0
    %451 = vmatprep.subr.mxu0 0.0
    %452 = vmatpush2.msra.mxu0 0.0
    %453 = vmatprep.subr.mxu0 0.0
    %454 = vmatpush2.msra.mxu0 0.0
    %455 = vmatprep.subr.mxu0 0.0
    %456 = vmatpush2.msra.mxu0 0.0
    %457 = vmatprep.subr.mxu0 0.0
    %458 = vmatpush2.msra.mxu0 0.0
    %459 = vmatprep.subr.mxu0 0.0
    %460 = vmatpush2.msra.mxu0 0.0
    %461 = vmatprep.subr.mxu0 0.0
    %462 = vmatpush2.msra.mxu0 0.0
    %463 = vmatprep.subr.mxu0 0.0
    %464 = vmatpush2.msra.mxu0 0.0
    %465 = vmatprep.subr.mxu0 0.0
    %466 = vmatpush2.msra.mxu0 0.0
    %467 = vmatprep.subr.mxu0 0.0
    %468 = vmatpush2.msra.mxu0 0.0
    %469 = vmatprep.subr.mxu0 0.0
    %470 = vmatpush2.msra.mxu0 0.0
    %471 = vmatprep.subr.mxu0 0.0
    %472 = vmatpush2.msra.mxu0 0.0
    %473 = vmatprep.subr.mxu0 0.0
    %474 = vmatpush2.msra.mxu0 0.0
    %475 = vmatprep.subr.mxu0 0.0
    %476 = vmatpush2.msra.mxu0 0.0
    %477 = vmatprep.subr.mxu0 0.0
    %478 = vmatpush2.msra.mxu0 0.0
    %479 = vmatprep.mubr.f32.mxu0 0.0
    %480 = vmatmul.mubr.f32.gmra.mxu0 %v413
    %v481 = vpop.f32.mrf.mxu0
    %v482 = vadd.f32 0.0, %v481
    %v483 = vpop.f32.mrf.mxu0
    %484 = vdwg.mxu0
    %v486 = vrot.slane %v482, 4
    %v488 = vadd.f32 %v114, %v486
    %v489 = vxor.u32 %v488, 2147483648
    %v490 = vmul.f32 %v489, 1.442695
    %v491 = vpow.pop %v490
    %v492 = vadd.f32 %v491, 1.0
    %v493 = vrcp.pop %v492
    %v494 = vmul.f32 1.0, %v493
    %v495 = vtanh.pop %v488
    %v497 = vrot.slane %v362, 6
    %v499 = vmul.f32 %v494, %v497
    %501 = vrot.lane.b32.xlu0 %v495, 64
    %v502 = vpop.permute.xlu0 %501
    %v504 = vmul.f32 %v494, %v502
    %506 = vrot.lane.b32.xlu0 %v504, 32
    %v507 = vpop.permute.xlu0 %506
    %v509 = vadd.f32 %v499, %v507
    %v510 = vtanh.pop %v509
    %512 = vrot.lane.b32.xlu0 %v510, 64
    %v513 = vpop.permute.xlu0 %512
    %v515 = vmul.f32 %v494, %v513
    %v517 = vcombine.high %v515, %v515
    %v519 = vunpack.c.l.s4 1966171168
    %v520 = vunpack.c.0.s8 %v519
    %v521 = vlaneseq
    %v522 = vshrl.u32 %v521, 7
    %v523 = vsub.s32 %v520, %v522
    %v524 = vrot.slane %v517, %v523
    %v525 = vcombine.high %v524, %v524
    %v527 = vunpack.c.l.s4 1966171168
    %v528 = vunpack.c.0.s8 %v527
    %v529 = vlaneseq
    %v530 = vshrl.u32 %v529, 7
    %v531 = vsub.s32 %v528, %v530
    %v532 = vrot.slane %v524, %v531
    %v534 = vunpack.c.l.s4 1966171168
    %v535 = vunpack.c.0.s8 %v534
    %v536 = vlaneseq
    %v537 = vshrl.u32 %v536, 7
    %v538 = vsub.s32 %v535, %v537
    %v539 = vrot.slane %v525, %v538
    %v540 = vlaneseq
    %v541 = vshrl.u32 %v540, 7
    %v542 = vsub.s32 0, %v541
    %v543 = vrot.slane %v532, %v542
    %v544 = vlaneseq
    %v545 = vshrl.u32 %v544, 7
    %v546 = vsub.s32 0, %v545
    %v547 = vrot.slane %v539, %v546
    %548 = vrot.lane.b32.xlu0 %v543, 32
    %v549 = vpop.permute.xlu0 %548
    %550 = vrot.lane.b32.xlu0 %v547, 32
    %v551 = vpop.permute.xlu0 %550
    %554 = vst.msk [vmem:[#allocation2 + $0x2] sm:$0x1] %vm261, %v549
    %555 = vst.msk [vmem:[#allocation2 + $0xa] sm:$0x1] %vm261, %v551
    %v556 = vrot.slane %v515, 4
    %557 = vrot.lane.b32.xlu0 %v556, 32
    %v558 = vpop.permute.xlu0 %557
    %v559 = vsel %vm40, %v558, 0
    %561 = vmatprep.subr.mxu0 0.0
    %562 = vmatpush1.msra.mxu0 0.0
    %563 = vmatprep.subr.mxu0 0.0
    %564 = vmatpush1.msra.mxu0 0.0
    %565 = vmatprep.subr.mxu0 0.0
    %566 = vmatpush1.msra.mxu0 0.0
    %567 = vmatprep.subr.mxu0 0.0
    %568 = vmatpush1.msra.mxu0 0.0
    %569 = vmatprep.subr.mxu0 0.0
    %570 = vmatpush1.msra.mxu0 0.0
    %571 = vmatprep.subr.mxu0 0.0
    %572 = vmatpush1.msra.mxu0 0.0
    %573 = vmatprep.subr.mxu0 0.0
    %574 = vmatpush1.msra.mxu0 0.0
    %575 = vmatprep.subr.mxu0 0.0
    %576 = vmatpush1.msra.mxu0 0.0
    %577 = vmatprep.subr.mxu0 0.0
    %578 = vmatpush1.msra.mxu0 0.0
    %579 = vmatprep.subr.mxu0 0.0
    %580 = vmatpush1.msra.mxu0 0.0
    %581 = vmatprep.subr.mxu0 0.0
    %582 = vmatpush1.msra.mxu0 0.0
    %583 = vmatprep.subr.mxu0 0.0
    %584 = vmatpush1.msra.mxu0 0.0
    %585 = vmatprep.subr.mxu0 0.0
    %586 = vmatpush1.msra.mxu0 %v125
    %587 = vmatprep.subr.mxu0 0.0
    %588 = vmatpush1.msra.mxu0 %v124
    %589 = vmatprep.subr.mxu0 0.0
    %590 = vmatpush1.msra.mxu0 %v123
    %591 = vmatprep.subr.mxu0 0.0
    %592 = vmatpush1.msra.mxu0 %v122
    %593 = vmatprep.subr.mxu0 0.0
    %594 = vmatpush2.msra.mxu0 0.0
    %595 = vmatprep.subr.mxu0 0.0
    %596 = vmatpush2.msra.mxu0 0.0
    %597 = vmatprep.subr.mxu0 0.0
    %598 = vmatpush2.msra.mxu0 0.0
    %599 = vmatprep.subr.mxu0 0.0
    %600 = vmatpush2.msra.mxu0 0.0
    %601 = vmatprep.subr.mxu0 0.0
    %602 = vmatpush2.msra.mxu0 0.0
    %603 = vmatprep.subr.mxu0 0.0
    %604 = vmatpush2.msra.mxu0 0.0
    %605 = vmatprep.subr.mxu0 0.0
    %606 = vmatpush2.msra.mxu0 0.0
    %607 = vmatprep.subr.mxu0 0.0
    %608 = vmatpush2.msra.mxu0 0.0
    %609 = vmatprep.subr.mxu0 0.0
    %610 = vmatpush2.msra.mxu0 0.0
    %611 = vmatprep.subr.mxu0 0.0
    %612 = vmatpush2.msra.mxu0 0.0
    %613 = vmatprep.subr.mxu0 0.0
    %614 = vmatpush2.msra.mxu0 0.0
    %615 = vmatprep.subr.mxu0 0.0
    %616 = vmatpush2.msra.mxu0 0.0
    %617 = vmatprep.subr.mxu0 0.0
    %618 = vmatpush2.msra.mxu0 0.0
    %619 = vmatprep.subr.mxu0 0.0
    %620 = vmatpush2.msra.mxu0 0.0
    %621 = vmatprep.subr.mxu0 0.0
    %622 = vmatpush2.msra.mxu0 0.0
    %623 = vmatprep.subr.mxu0 0.0
    %624 = vmatpush2.msra.mxu0 0.0
    %625 = vmatprep.mubr.f32.mxu0 0.0
    %626 = vmatmul.mubr.f32.gmra.mxu0 %v559
    %v627 = vpop.f32.mrf.mxu0
    %v628 = vadd.f32 0.0, %v627
    %v629 = vpop.f32.mrf.mxu0
    %630 = vdwg.mxu0
    %v632 = vrot.slane %v628, 2
    %v634 = vadd.f32 %v114, %v632
    %v635 = vxor.u32 %v634, 2147483648
    %v636 = vmul.f32 %v635, 1.442695
    %v637 = vpow.pop %v636
    %v638 = vadd.f32 %v637, 1.0
    %v639 = vrcp.pop %v638
    %v640 = vmul.f32 1.0, %v639
    %v641 = vtanh.pop %v634
    %v643 = vrot.slane %v509, 6
    %v645 = vmul.f32 %v640, %v643
    %647 = vrot.lane.b32.xlu0 %v641, 64
    %v648 = vpop.permute.xlu0 %647
    %v650 = vmul.f32 %v640, %v648
    %652 = vrot.lane.b32.xlu0 %v650, 32
    %v653 = vpop.permute.xlu0 %652
    %v655 = vadd.f32 %v645, %v653
    %v656 = vtanh.pop %v655
    %658 = vrot.lane.b32.xlu0 %v656, 64
    %v659 = vpop.permute.xlu0 %658
    %v661 = vmul.f32 %v640, %v659
    %v663 = vcombine.high %v661, %v661
    %v665 = vunpack.c.l.s4 1966171168
    %v666 = vunpack.c.0.s8 %v665
    %v667 = vlaneseq
    %v668 = vshrl.u32 %v667, 7
    %v669 = vsub.s32 %v666, %v668
    %v670 = vrot.slane %v663, %v669
    %v671 = vcombine.high %v670, %v670
    %v673 = vunpack.c.l.s4 1966171168
    %v674 = vunpack.c.0.s8 %v673
    %v675 = vlaneseq
    %v676 = vshrl.u32 %v675, 7
    %v677 = vsub.s32 %v674, %v676
    %v678 = vrot.slane %v670, %v677
    %v680 = vunpack.c.l.s4 1966171168
    %v681 = vunpack.c.0.s8 %v680
    %v682 = vlaneseq
    %v683 = vshrl.u32 %v682, 7
    %v684 = vsub.s32 %v681, %v683
    %v685 = vrot.slane %v671, %v684
    %v686 = vcombine.high %v678, %v678
    %v687 = vcombine.high %v685, %v685
    %v688 = vlaneseq
    %v689 = vshrl.u32 %v688, 7
    %v690 = vsub.s32 0, %v689
    %v691 = vrot.slane %v686, %v690
    %v692 = vlaneseq
    %v693 = vshrl.u32 %v692, 7
    %v694 = vsub.s32 0, %v693
    %v695 = vrot.slane %v687, %v694
    %696 = vrot.lane.b32.xlu0 %v691, 32
    %v697 = vpop.permute.xlu0 %696
    %698 = vrot.lane.b32.xlu0 %v695, 32
    %v699 = vpop.permute.xlu0 %698
    %702 = vst.msk [vmem:[#allocation2 + $0x3] sm:$0x1] %vm261, %v697
    %703 = vst.msk [vmem:[#allocation2 + $0xb] sm:$0x1] %vm261, %v699
    %v704 = vrot.slane %v661, 6
    %705 = vrot.lane.b32.xlu0 %v704, 32
    %v706 = vpop.permute.xlu0 %705
    %v707 = vsel %vm40, %v706, 0
    %709 = vmatprep.subr.mxu0 0.0
    %710 = vmatpush1.msra.mxu0 0.0
    %711 = vmatprep.subr.mxu0 0.0
    %712 = vmatpush1.msra.mxu0 0.0
    %713 = vmatprep.subr.mxu0 0.0
    %714 = vmatpush1.msra.mxu0 0.0
    %715 = vmatprep.subr.mxu0 0.0
    %716 = vmatpush1.msra.mxu0 0.0
    %717 = vmatprep.subr.mxu0 0.0
    %718 = vmatpush1.msra.mxu0 0.0
    %719 = vmatprep.subr.mxu0 0.0
    %720 = vmatpush1.msra.mxu0 0.0
    %721 = vmatprep.subr.mxu0 0.0
    %722 = vmatpush1.msra.mxu0 0.0
    %723 = vmatprep.subr.mxu0 0.0
    %724 = vmatpush1.msra.mxu0 0.0
    %725 = vmatprep.subr.mxu0 0.0
    %726 = vmatpush1.msra.mxu0 0.0
    %727 = vmatprep.subr.mxu0 0.0
    %728 = vmatpush1.msra.mxu0 0.0
    %729 = vmatprep.subr.mxu0 0.0
    %730 = vmatpush1.msra.mxu0 0.0
    %731 = vmatprep.subr.mxu0 0.0
    %732 = vmatpush1.msra.mxu0 0.0
    %733 = vmatprep.subr.mxu0 0.0
    %734 = vmatpush1.msra.mxu0 %v125
    %735 = vmatprep.subr.mxu0 0.0
    %736 = vmatpush1.msra.mxu0 %v124
    %737 = vmatprep.subr.mxu0 0.0
    %738 = vmatpush1.msra.mxu0 %v123
    %739 = vmatprep.subr.mxu0 0.0
    %740 = vmatpush1.msra.mxu0 %v122
    %741 = vmatprep.subr.mxu0 0.0
    %742 = vmatpush2.msra.mxu0 0.0
    %743 = vmatprep.subr.mxu0 0.0
    %744 = vmatpush2.msra.mxu0 0.0
    %745 = vmatprep.subr.mxu0 0.0
    %746 = vmatpush2.msra.mxu0 0.0
    %747 = vmatprep.subr.mxu0 0.0
    %748 = vmatpush2.msra.mxu0 0.0
    %749 = vmatprep.subr.mxu0 0.0
    %750 = vmatpush2.msra.mxu0 0.0
    %751 = vmatprep.subr.mxu0 0.0
    %752 = vmatpush2.msra.mxu0 0.0
    %753 = vmatprep.subr.mxu0 0.0
    %754 = vmatpush2.msra.mxu0 0.0
    %755 = vmatprep.subr.mxu0 0.0
    %756 = vmatpush2.msra.mxu0 0.0
    %757 = vmatprep.subr.mxu0 0.0
    %758 = vmatpush2.msra.mxu0 0.0
    %759 = vmatprep.subr.mxu0 0.0
    %760 = vmatpush2.msra.mxu0 0.0
    %761 = vmatprep.subr.mxu0 0.0
    %762 = vmatpush2.msra.mxu0 0.0
    %763 = vmatprep.subr.mxu0 0.0
    %764 = vmatpush2.msra.mxu0 0.0
    %765 = vmatprep.subr.mxu0 0.0
    %766 = vmatpush2.msra.mxu0 0.0
    %767 = vmatprep.subr.mxu0 0.0
    %768 = vmatpush2.msra.mxu0 0.0
    %769 = vmatprep.subr.mxu0 0.0
    %770 = vmatpush2.msra.mxu0 0.0
    %771 = vmatprep.subr.mxu0 0.0
    %772 = vmatpush2.msra.mxu0 0.0
    %773 = vmatprep.mubr.f32.mxu0 0.0
    %774 = vmatmul.mubr.f32.gmra.mxu0 %v707
    %v775 = vpop.f32.mrf.mxu0
    %v776 = vadd.f32 0.0, %v775
    %v777 = vpop.f32.mrf.mxu0
    %778 = vdwg.mxu0
    %v779 = vadd.f32 %v119, %v776
    %v780 = vxor.u32 %v779, 2147483648
    %v781 = vmul.f32 %v780, 1.442695
    %v782 = vpow.pop %v781
    %v783 = vadd.f32 %v782, 1.0
    %v784 = vrcp.pop %v783
    %v785 = vmul.f32 1.0, %v784
    %v786 = vtanh.pop %v779
    %v788 = vrot.slane %v655, 6
    %v790 = vmul.f32 %v785, %v788
    %792 = vrot.lane.b32.xlu0 %v786, 64
    %v793 = vpop.permute.xlu0 %792
    %v795 = vmul.f32 %v785, %v793
    %797 = vrot.lane.b32.xlu0 %v795, 32
    %v798 = vpop.permute.xlu0 %797
    %v800 = vadd.f32 %v790, %v798
    %v801 = vtanh.pop %v800
    %803 = vrot.lane.b32.xlu0 %v801, 64
    %v804 = vpop.permute.xlu0 %803
    %v806 = vmul.f32 %v785, %v804
    %v809 = vunpack.c.l.s4 1966171168
    %v810 = vunpack.c.0.s8 %v809
    %v811 = vlaneseq
    %v812 = vshrl.u32 %v811, 7
    %v813 = vsub.s32 %v810, %v812
    %v814 = vrot.slane %v806, %v813
    %v815 = vcombine.high %v814, %v814
    %v817 = vunpack.c.l.s4 1966171168
    %v818 = vunpack.c.0.s8 %v817
    %v819 = vlaneseq
    %v820 = vshrl.u32 %v819, 7
    %v821 = vsub.s32 %v818, %v820
    %v822 = vrot.slane %v814, %v821
    %v824 = vunpack.c.l.s4 1966171168
    %v825 = vunpack.c.0.s8 %v824
    %v826 = vlaneseq
    %v827 = vshrl.u32 %v826, 7
    %v828 = vsub.s32 %v825, %v827
    %v829 = vrot.slane %v815, %v828
    %v830 = vlaneseq
    %v831 = vshrl.u32 %v830, 7
    %v832 = vsub.s32 0, %v831
    %v833 = vrot.slane %v822, %v832
    %v834 = vlaneseq
    %v835 = vshrl.u32 %v834, 7
    %v836 = vsub.s32 0, %v835
    %v837 = vrot.slane %v829, %v836
    %838 = vrot.lane.b32.xlu0 %v833, 32
    %v839 = vpop.permute.xlu0 %838
    %840 = vrot.lane.b32.xlu0 %v837, 32
    %v841 = vpop.permute.xlu0 %840
    %844 = vst.msk [vmem:[#allocation2 + $0x4] sm:$0x1] %vm261, %v839
    %845 = vst.msk [vmem:[#allocation2 + $0xc] sm:$0x1] %vm261, %v841
    %846 = vrot.lane.b32.xlu0 %v806, 32
    %v847 = vpop.permute.xlu0 %846
    %v848 = vsel %vm40, %v847, 0
    %850 = vmatprep.subr.mxu0 0.0
    %851 = vmatpush1.msra.mxu0 0.0
    %852 = vmatprep.subr.mxu0 0.0
    %853 = vmatpush1.msra.mxu0 0.0
    %854 = vmatprep.subr.mxu0 0.0
    %855 = vmatpush1.msra.mxu0 0.0
    %856 = vmatprep.subr.mxu0 0.0
    %857 = vmatpush1.msra.mxu0 0.0
    %858 = vmatprep.subr.mxu0 0.0
    %859 = vmatpush1.msra.mxu0 0.0
    %860 = vmatprep.subr.mxu0 0.0
    %861 = vmatpush1.msra.mxu0 0.0
    %862 = vmatprep.subr.mxu0 0.0
    %863 = vmatpush1.msra.mxu0 0.0
    %864 = vmatprep.subr.mxu0 0.0
    %865 = vmatpush1.msra.mxu0 0.0
    %866 = vmatprep.subr.mxu0 0.0
    %867 = vmatpush1.msra.mxu0 0.0
    %868 = vmatprep.subr.mxu0 0.0
    %869 = vmatpush1.msra.mxu0 0.0
    %870 = vmatprep.subr.mxu0 0.0
    %871 = vmatpush1.msra.mxu0 0.0
    %872 = vmatprep.subr.mxu0 0.0
    %873 = vmatpush1.msra.mxu0 0.0
    %874 = vmatprep.subr.mxu0 0.0
    %875 = vmatpush1.msra.mxu0 %v125
    %876 = vmatprep.subr.mxu0 0.0
    %877 = vmatpush1.msra.mxu0 %v124
    %878 = vmatprep.subr.mxu0 0.0
    %879 = vmatpush1.msra.mxu0 %v123
    %880 = vmatprep.subr.mxu0 0.0
    %881 = vmatpush1.msra.mxu0 %v122
    %882 = vmatprep.subr.mxu0 0.0
    %883 = vmatpush2.msra.mxu0 0.0
    %884 = vmatprep.subr.mxu0 0.0
    %885 = vmatpush2.msra.mxu0 0.0
    %886 = vmatprep.subr.mxu0 0.0
    %887 = vmatpush2.msra.mxu0 0.0
    %888 = vmatprep.subr.mxu0 0.0
    %889 = vmatpush2.msra.mxu0 0.0
    %890 = vmatprep.subr.mxu0 0.0
    %891 = vmatpush2.msra.mxu0 0.0
    %892 = vmatprep.subr.mxu0 0.0
    %893 = vmatpush2.msra.mxu0 0.0
    %894 = vmatprep.subr.mxu0 0.0
    %895 = vmatpush2.msra.mxu0 0.0
    %896 = vmatprep.subr.mxu0 0.0
    %897 = vmatpush2.msra.mxu0 0.0
    %898 = vmatprep.subr.mxu0 0.0
    %899 = vmatpush2.msra.mxu0 0.0
    %900 = vmatprep.subr.mxu0 0.0
    %901 = vmatpush2.msra.mxu0 0.0
    %902 = vmatprep.subr.mxu0 0.0
    %903 = vmatpush2.msra.mxu0 0.0
    %904 = vmatprep.subr.mxu0 0.0
    %905 = vmatpush2.msra.mxu0 0.0
    %906 = vmatprep.subr.mxu0 0.0
    %907 = vmatpush2.msra.mxu0 0.0
    %908 = vmatprep.subr.mxu0 0.0
    %909 = vmatpush2.msra.mxu0 0.0
    %910 = vmatprep.subr.mxu0 0.0
    %911 = vmatpush2.msra.mxu0 0.0
    %912 = vmatprep.subr.mxu0 0.0
    %913 = vmatpush2.msra.mxu0 0.0
    %914 = vmatprep.mubr.f32.mxu0 0.0
    %915 = vmatmul.mubr.f32.gmra.mxu0 %v848
    %v916 = vpop.f32.mrf.mxu0
    %v917 = vadd.f32 0.0, %v916
    %v918 = vpop.f32.mrf.mxu0
    %919 = vdwg.mxu0
    %v921 = vrot.slane %v917, 6
    %v923 = vadd.f32 %v119, %v921
    %v924 = vxor.u32 %v923, 2147483648
    %v925 = vmul.f32 %v924, 1.442695
    %v926 = vpow.pop %v925
    %v927 = vadd.f32 %v926, 1.0
    %v928 = vrcp.pop %v927
    %v929 = vmul.f32 1.0, %v928
    %v930 = vtanh.pop %v923
    %v932 = vrot.slane %v800, 6
    %v934 = vmul.f32 %v929, %v932
    %936 = vrot.lane.b32.xlu0 %v930, 64
    %v937 = vpop.permute.xlu0 %936
    %v939 = vmul.f32 %v929, %v937
    %941 = vrot.lane.b32.xlu0 %v939, 32
    %v942 = vpop.permute.xlu0 %941
    %v944 = vadd.f32 %v934, %v942
    %v945 = vtanh.pop %v944
    %947 = vrot.lane.b32.xlu0 %v945, 64
    %v948 = vpop.permute.xlu0 %947
    %v950 = vmul.f32 %v929, %v948
    %v953 = vunpack.c.l.s4 1966171168
    %v954 = vunpack.c.0.s8 %v953
    %v955 = vlaneseq
    %v956 = vshrl.u32 %v955, 7
    %v957 = vsub.s32 %v954, %v956
    %v958 = vrot.slane %v950, %v957
    %v959 = vcombine.high %v958, %v958
    %v961 = vunpack.c.l.s4 1966171168
    %v962 = vunpack.c.0.s8 %v961
    %v963 = vlaneseq
    %v964 = vshrl.u32 %v963, 7
    %v965 = vsub.s32 %v962, %v964
    %v966 = vrot.slane %v958, %v965
    %v968 = vunpack.c.l.s4 1966171168
    %v969 = vunpack.c.0.s8 %v968
    %v970 = vlaneseq
    %v971 = vshrl.u32 %v970, 7
    %v972 = vsub.s32 %v969, %v971
    %v973 = vrot.slane %v959, %v972
    %v974 = vcombine.high %v966, %v966
    %v975 = vcombine.high %v973, %v973
    %v976 = vlaneseq
    %v977 = vshrl.u32 %v976, 7
    %v978 = vsub.s32 0, %v977
    %v979 = vrot.slane %v974, %v978
    %v980 = vlaneseq
    %v981 = vshrl.u32 %v980, 7
    %v982 = vsub.s32 0, %v981
    %v983 = vrot.slane %v975, %v982
    %984 = vrot.lane.b32.xlu0 %v979, 32
    %v985 = vpop.permute.xlu0 %984
    %986 = vrot.lane.b32.xlu0 %v983, 32
    %v987 = vpop.permute.xlu0 %986
    %990 = vst.msk [vmem:[#allocation2 + $0x5] sm:$0x1] %vm261, %v985
    %991 = vst.msk [vmem:[#allocation2 + $0xd] sm:$0x1] %vm261, %v987
    %v992 = vrot.slane %v950, 2
    %993 = vrot.lane.b32.xlu0 %v992, 32
    %v994 = vpop.permute.xlu0 %993
    %v995 = vsel %vm40, %v994, 0
    %997 = vmatprep.subr.mxu0 0.0
    %998 = vmatpush1.msra.mxu0 0.0
    %999 = vmatprep.subr.mxu0 0.0
    %1000 = vmatpush1.msra.mxu0 0.0
    %1001 = vmatprep.subr.mxu0 0.0
    %1002 = vmatpush1.msra.mxu0 0.0
    %1003 = vmatprep.subr.mxu0 0.0
    %1004 = vmatpush1.msra.mxu0 0.0
    %1005 = vmatprep.subr.mxu0 0.0
    %1006 = vmatpush1.msra.mxu0 0.0
    %1007 = vmatprep.subr.mxu0 0.0
    %1008 = vmatpush1.msra.mxu0 0.0
    %1009 = vmatprep.subr.mxu0 0.0
    %1010 = vmatpush1.msra.mxu0 0.0
    %1011 = vmatprep.subr.mxu0 0.0
    %1012 = vmatpush1.msra.mxu0 0.0
    %1013 = vmatprep.subr.mxu0 0.0
    %1014 = vmatpush1.msra.mxu0 0.0
    %1015 = vmatprep.subr.mxu0 0.0
    %1016 = vmatpush1.msra.mxu0 0.0
    %1017 = vmatprep.subr.mxu0 0.0
    %1018 = vmatpush1.msra.mxu0 0.0
    %1019 = vmatprep.subr.mxu0 0.0
    %1020 = vmatpush1.msra.mxu0 0.0
    %1021 = vmatprep.subr.mxu0 0.0
    %1022 = vmatpush1.msra.mxu0 %v125
    %1023 = vmatprep.subr.mxu0 0.0
    %1024 = vmatpush1.msra.mxu0 %v124
    %1025 = vmatprep.subr.mxu0 0.0
    %1026 = vmatpush1.msra.mxu0 %v123
    %1027 = vmatprep.subr.mxu0 0.0
    %1028 = vmatpush1.msra.mxu0 %v122
    %1029 = vmatprep.subr.mxu0 0.0
    %1030 = vmatpush2.msra.mxu0 0.0
    %1031 = vmatprep.subr.mxu0 0.0
    %1032 = vmatpush2.msra.mxu0 0.0
    %1033 = vmatprep.subr.mxu0 0.0
    %1034 = vmatpush2.msra.mxu0 0.0
    %1035 = vmatprep.subr.mxu0 0.0
    %1036 = vmatpush2.msra.mxu0 0.0
    %1037 = vmatprep.subr.mxu0 0.0
    %1038 = vmatpush2.msra.mxu0 0.0
    %1039 = vmatprep.subr.mxu0 0.0
    %1040 = vmatpush2.msra.mxu0 0.0
    %1041 = vmatprep.subr.mxu0 0.0
    %1042 = vmatpush2.msra.mxu0 0.0
    %1043 = vmatprep.subr.mxu0 0.0
    %1044 = vmatpush2.msra.mxu0 0.0
    %1045 = vmatprep.subr.mxu0 0.0
    %1046 = vmatpush2.msra.mxu0 0.0
    %1047 = vmatprep.subr.mxu0 0.0
    %1048 = vmatpush2.msra.mxu0 0.0
    %1049 = vmatprep.subr.mxu0 0.0
    %1050 = vmatpush2.msra.mxu0 0.0
    %1051 = vmatprep.subr.mxu0 0.0
    %1052 = vmatpush2.msra.mxu0 0.0
    %1053 = vmatprep.subr.mxu0 0.0
    %1054 = vmatpush2.msra.mxu0 0.0
    %1055 = vmatprep.subr.mxu0 0.0
    %1056 = vmatpush2.msra.mxu0 0.0
    %1057 = vmatprep.subr.mxu0 0.0
    %1058 = vmatpush2.msra.mxu0 0.0
    %1059 = vmatprep.subr.mxu0 0.0
    %1060 = vmatpush2.msra.mxu0 0.0
    %1061 = vmatprep.mubr.f32.mxu0 0.0
    %1062 = vmatmul.mubr.f32.gmra.mxu0 %v995
    %v1063 = vpop.f32.mrf.mxu0
    %v1064 = vadd.f32 0.0, %v1063
    %v1065 = vpop.f32.mrf.mxu0
    %1066 = vdwg.mxu0
    %v1068 = vrot.slane %v1064, 4
    %v1070 = vadd.f32 %v119, %v1068
    %v1071 = vxor.u32 %v1070, 2147483648
    %v1072 = vmul.f32 %v1071, 1.442695
    %v1073 = vpow.pop %v1072
    %v1074 = vadd.f32 %v1073, 1.0
    %v1075 = vrcp.pop %v1074
    %v1076 = vmul.f32 1.0, %v1075
    %v1077 = vtanh.pop %v1070
    %v1079 = vrot.slane %v944, 6
    %v1081 = vmul.f32 %v1076, %v1079
    %1083 = vrot.lane.b32.xlu0 %v1077, 64
    %v1084 = vpop.permute.xlu0 %1083
    %v1086 = vmul.f32 %v1076, %v1084
    %1088 = vrot.lane.b32.xlu0 %v1086, 32
    %v1089 = vpop.permute.xlu0 %1088
    %v1091 = vadd.f32 %v1081, %v1089
    %v1092 = vtanh.pop %v1091
    %1094 = vrot.lane.b32.xlu0 %v1092, 64
    %v1095 = vpop.permute.xlu0 %1094
    %v1097 = vmul.f32 %v1076, %v1095
    %v1099 = vcombine.high %v1097, %v1097
    %v1101 = vunpack.c.l.s4 1966171168
    %v1102 = vunpack.c.0.s8 %v1101
    %v1103 = vlaneseq
    %v1104 = vshrl.u32 %v1103, 7
    %v1105 = vsub.s32 %v1102, %v1104
    %v1106 = vrot.slane %v1099, %v1105
    %v1107 = vcombine.high %v1106, %v1106
    %v1109 = vunpack.c.l.s4 1966171168
    %v1110 = vunpack.c.0.s8 %v1109
    %v1111 = vlaneseq
    %v1112 = vshrl.u32 %v1111, 7
    %v1113 = vsub.s32 %v1110, %v1112
    %v1114 = vrot.slane %v1106, %v1113
    %v1116 = vunpack.c.l.s4 1966171168
    %v1117 = vunpack.c.0.s8 %v1116
    %v1118 = vlaneseq
    %v1119 = vshrl.u32 %v1118, 7
    %v1120 = vsub.s32 %v1117, %v1119
    %v1121 = vrot.slane %v1107, %v1120
    %v1122 = vlaneseq
    %v1123 = vshrl.u32 %v1122, 7
    %v1124 = vsub.s32 0, %v1123
    %v1125 = vrot.slane %v1114, %v1124
    %v1126 = vlaneseq
    %v1127 = vshrl.u32 %v1126, 7
    %v1128 = vsub.s32 0, %v1127
    %v1129 = vrot.slane %v1121, %v1128
    %1130 = vrot.lane.b32.xlu0 %v1125, 32
    %v1131 = vpop.permute.xlu0 %1130
    %1132 = vrot.lane.b32.xlu0 %v1129, 32
    %v1133 = vpop.permute.xlu0 %1132
    %1136 = vst.msk [vmem:[#allocation2 + $0x6] sm:$0x1] %vm261, %v1131
    %1137 = vst.msk [vmem:[#allocation2 + $0xe] sm:$0x1] %vm261, %v1133
    %v1138 = vrot.slane %v1097, 4
    %1139 = vrot.lane.b32.xlu0 %v1138, 32
    %v1140 = vpop.permute.xlu0 %1139
    %v1141 = vsel %vm40, %v1140, 0
    %1143 = vmatprep.subr.mxu0 0.0
    %1144 = vmatpush1.msra.mxu0 0.0
    %1145 = vmatprep.subr.mxu0 0.0
    %1146 = vmatpush1.msra.mxu0 0.0
    %1147 = vmatprep.subr.mxu0 0.0
    %1148 = vmatpush1.msra.mxu0 0.0
    %1149 = vmatprep.subr.mxu0 0.0
    %1150 = vmatpush1.msra.mxu0 0.0
    %1151 = vmatprep.subr.mxu0 0.0
    %1152 = vmatpush1.msra.mxu0 0.0
    %1153 = vmatprep.subr.mxu0 0.0
    %1154 = vmatpush1.msra.mxu0 0.0
    %1155 = vmatprep.subr.mxu0 0.0
    %1156 = vmatpush1.msra.mxu0 0.0
    %1157 = vmatprep.subr.mxu0 0.0
    %1158 = vmatpush1.msra.mxu0 0.0
    %1159 = vmatprep.subr.mxu0 0.0
    %1160 = vmatpush1.msra.mxu0 0.0
    %1161 = vmatprep.subr.mxu0 0.0
    %1162 = vmatpush1.msra.mxu0 0.0
    %1163 = vmatprep.subr.mxu0 0.0
    %1164 = vmatpush1.msra.mxu0 0.0
    %1165 = vmatprep.subr.mxu0 0.0
    %1166 = vmatpush1.msra.mxu0 0.0
    %1167 = vmatprep.subr.mxu0 0.0
    %1168 = vmatpush1.msra.mxu0 %v125
    %1169 = vmatprep.subr.mxu0 0.0
    %1170 = vmatpush1.msra.mxu0 %v124
    %1171 = vmatprep.subr.mxu0 0.0
    %1172 = vmatpush1.msra.mxu0 %v123
    %1173 = vmatprep.subr.mxu0 0.0
    %1174 = vmatpush1.msra.mxu0 %v122
    %1175 = vmatprep.subr.mxu0 0.0
    %1176 = vmatpush2.msra.mxu0 0.0
    %1177 = vmatprep.subr.mxu0 0.0
    %1178 = vmatpush2.msra.mxu0 0.0
    %1179 = vmatprep.subr.mxu0 0.0
    %1180 = vmatpush2.msra.mxu0 0.0
    %1181 = vmatprep.subr.mxu0 0.0
    %1182 = vmatpush2.msra.mxu0 0.0
    %1183 = vmatprep.subr.mxu0 0.0
    %1184 = vmatpush2.msra.mxu0 0.0
    %1185 = vmatprep.subr.mxu0 0.0
    %1186 = vmatpush2.msra.mxu0 0.0
    %1187 = vmatprep.subr.mxu0 0.0
    %1188 = vmatpush2.msra.mxu0 0.0
    %1189 = vmatprep.subr.mxu0 0.0
    %1190 = vmatpush2.msra.mxu0 0.0
    %1191 = vmatprep.subr.mxu0 0.0
    %1192 = vmatpush2.msra.mxu0 0.0
    %1193 = vmatprep.subr.mxu0 0.0
    %1194 = vmatpush2.msra.mxu0 0.0
    %1195 = vmatprep.subr.mxu0 0.0
    %1196 = vmatpush2.msra.mxu0 0.0
    %1197 = vmatprep.subr.mxu0 0.0
    %1198 = vmatpush2.msra.mxu0 0.0
    %1199 = vmatprep.subr.mxu0 0.0
    %1200 = vmatpush2.msra.mxu0 0.0
    %1201 = vmatprep.subr.mxu0 0.0
    %1202 = vmatpush2.msra.mxu0 0.0
    %1203 = vmatprep.subr.mxu0 0.0
    %1204 = vmatpush2.msra.mxu0 0.0
    %1205 = vmatprep.subr.mxu0 0.0
    %1206 = vmatpush2.msra.mxu0 0.0
    %1207 = vmatprep.mubr.f32.mxu0 0.0
    %1208 = vmatmul.mubr.f32.gmra.mxu0 %v1141
    %v1209 = vpop.f32.mrf.mxu0
    %v1210 = vadd.f32 0.0, %v1209
    %v1211 = vpop.f32.mrf.mxu0
    %1212 = vdwg.mxu0
    %v1214 = vrot.slane %v1210, 2
    %v1216 = vadd.f32 %v119, %v1214
    %v1217 = vxor.u32 %v1216, 2147483648
    %v1218 = vmul.f32 %v1217, 1.442695
    %v1219 = vpow.pop %v1218
    %v1220 = vadd.f32 %v1219, 1.0
    %v1221 = vrcp.pop %v1220
    %v1222 = vmul.f32 1.0, %v1221
    %v1223 = vtanh.pop %v1216
    %v1225 = vrot.slane %v1091, 6
    %v1227 = vmul.f32 %v1222, %v1225
    %1229 = vrot.lane.b32.xlu0 %v1223, 64
    %v1230 = vpop.permute.xlu0 %1229
    %v1232 = vmul.f32 %v1222, %v1230
    %1234 = vrot.lane.b32.xlu0 %v1232, 32
    %v1235 = vpop.permute.xlu0 %1234
    %v1237 = vadd.f32 %v1227, %v1235
    %v1238 = vtanh.pop %v1237
    %1240 = vrot.lane.b32.xlu0 %v1238, 64
    %v1241 = vpop.permute.xlu0 %1240
    %v1243 = vmul.f32 %v1222, %v1241
    %v1245 = vcombine.high %v1243, %v1243
    %v1247 = vunpack.c.l.s4 1966171168
    %v1248 = vunpack.c.0.s8 %v1247
    %v1249 = vlaneseq
    %v1250 = vshrl.u32 %v1249, 7
    %v1251 = vsub.s32 %v1248, %v1250
    %v1252 = vrot.slane %v1245, %v1251
    %v1253 = vcombine.high %v1252, %v1252
    %v1255 = vunpack.c.l.s4 1966171168
    %v1256 = vunpack.c.0.s8 %v1255
    %v1257 = vlaneseq
    %v1258 = vshrl.u32 %v1257, 7
    %v1259 = vsub.s32 %v1256, %v1258
    %v1260 = vrot.slane %v1252, %v1259
    %v1262 = vunpack.c.l.s4 1966171168
    %v1263 = vunpack.c.0.s8 %v1262
    %v1264 = vlaneseq
    %v1265 = vshrl.u32 %v1264, 7
    %v1266 = vsub.s32 %v1263, %v1265
    %v1267 = vrot.slane %v1253, %v1266
    %v1268 = vcombine.high %v1260, %v1260
    %v1269 = vcombine.high %v1267, %v1267
    %v1270 = vlaneseq
    %v1271 = vshrl.u32 %v1270, 7
    %v1272 = vsub.s32 0, %v1271
    %v1273 = vrot.slane %v1268, %v1272
    %v1274 = vlaneseq
    %v1275 = vshrl.u32 %v1274, 7
    %v1276 = vsub.s32 0, %v1275
    %v1277 = vrot.slane %v1269, %v1276
    %1278 = vrot.lane.b32.xlu0 %v1273, 32
    %v1279 = vpop.permute.xlu0 %1278
    %1280 = vrot.lane.b32.xlu0 %v1277, 32
    %v1281 = vpop.permute.xlu0 %1280
    %1284 = vst.msk [vmem:[#allocation2 + $0x7] sm:$0x1] %vm261, %v1279
    %1285 = vst.msk [vmem:[#allocation2 + $0xf] sm:$0x1] %vm261, %v1281
    %v1286 = vld [vmem:[#allocation2] sm:$0xff]
    %v1287 = vld [vmem:[#allocation2 + $0x8] sm:$0xff]
    %v1288 = vld [vmem:[%s4] sm:$0xff]
    %v1289 = vld [vmem:[%s4 + $0x8] sm:$0xff]
    %v1290 = vld [vmem:[%s4 + $0x10] sm:$0xff]
    %v1291 = vld [vmem:[%s4 + $0x18] sm:$0xff]
    %v1293 = vsel %vm40, %v1286, 0
    %v1296 = vsel %vm40, %v1287, 0
    %1298 = vmatprep.subr.mxu0 0.0
    %1299 = vmatpush1.msra.mxu0 0.0
    %1300 = vmatprep.subr.mxu0 0.0
    %1301 = vmatpush1.msra.mxu0 0.0
    %1302 = vmatprep.subr.mxu0 0.0
    %1303 = vmatpush1.msra.mxu0 0.0
    %1304 = vmatprep.subr.mxu0 0.0
    %1305 = vmatpush1.msra.mxu0 0.0
    %1306 = vmatprep.subr.mxu0 0.0
    %1307 = vmatpush1.msra.mxu0 0.0
    %1308 = vmatprep.subr.mxu0 0.0
    %1309 = vmatpush1.msra.mxu0 0.0
    %1310 = vmatprep.subr.mxu0 0.0
    %1311 = vmatpush1.msra.mxu0 0.0
    %1312 = vmatprep.subr.mxu0 0.0
    %1313 = vmatpush1.msra.mxu0 0.0
    %1314 = vmatprep.subr.mxu0 0.0
    %1315 = vmatpush1.msra.mxu0 0.0
    %1316 = vmatprep.subr.mxu0 0.0
    %1317 = vmatpush1.msra.mxu0 0.0
    %1318 = vmatprep.subr.mxu0 0.0
    %1319 = vmatpush1.msra.mxu0 0.0
    %1320 = vmatprep.subr.mxu0 0.0
    %1321 = vmatpush1.msra.mxu0 0.0
    %1322 = vmatprep.subr.mxu0 0.0
    %1323 = vmatpush1.msra.mxu0 %v1291
    %1324 = vmatprep.subr.mxu0 0.0
    %1325 = vmatpush1.msra.mxu0 %v1290
    %1326 = vmatprep.subr.mxu0 0.0
    %1327 = vmatpush1.msra.mxu0 %v1289
    %1328 = vmatprep.subr.mxu0 0.0
    %1329 = vmatpush1.msra.mxu0 %v1288
    %1330 = vmatprep.subr.mxu0 0.0
    %1331 = vmatpush2.msra.mxu0 0.0
    %1332 = vmatprep.subr.mxu0 0.0
    %1333 = vmatpush2.msra.mxu0 0.0
    %1334 = vmatprep.subr.mxu0 0.0
    %1335 = vmatpush2.msra.mxu0 0.0
    %1336 = vmatprep.subr.mxu0 0.0
    %1337 = vmatpush2.msra.mxu0 0.0
    %1338 = vmatprep.subr.mxu0 0.0
    %1339 = vmatpush2.msra.mxu0 0.0
    %1340 = vmatprep.subr.mxu0 0.0
    %1341 = vmatpush2.msra.mxu0 0.0
    %1342 = vmatprep.subr.mxu0 0.0
    %1343 = vmatpush2.msra.mxu0 0.0
    %1344 = vmatprep.subr.mxu0 0.0
    %1345 = vmatpush2.msra.mxu0 0.0
    %1346 = vmatprep.subr.mxu0 0.0
    %1347 = vmatpush2.msra.mxu0 0.0
    %1348 = vmatprep.subr.mxu0 0.0
    %1349 = vmatpush2.msra.mxu0 0.0
    %1350 = vmatprep.subr.mxu0 0.0
    %1351 = vmatpush2.msra.mxu0 0.0
    %1352 = vmatprep.subr.mxu0 0.0
    %1353 = vmatpush2.msra.mxu0 0.0
    %1354 = vmatprep.subr.mxu0 0.0
    %1355 = vmatpush2.msra.mxu0 0.0
    %1356 = vmatprep.subr.mxu0 0.0
    %1357 = vmatpush2.msra.mxu0 0.0
    %1358 = vmatprep.subr.mxu0 0.0
    %1359 = vmatpush2.msra.mxu0 0.0
    %1360 = vmatprep.subr.mxu0 0.0
    %1361 = vmatpush2.msra.mxu0 0.0
    %1362 = vmatprep.mubr.f32.mxu0 0.0
    %1363 = vmatmul.mubr.f32.gmra.mxu0 %v1293
    %v1364 = vpop.f32.mrf.mxu0
    %v1365 = vadd.f32 0.0, %v1364
    %v1366 = vpop.f32.mrf.mxu0
    %1367 = vmatprep.mubr.f32.mxu0 0.0
    %1368 = vmatmul.mubr.f32.gmra.mxu0 %v1296
    %v1369 = vpop.f32.mrf.mxu0
    %v1370 = vadd.f32 0.0, %v1369
    %v1371 = vpop.f32.mrf.mxu0
    %1372 = vdwg.mxu0
    %v1373 = vld [vmem:[%s5] sm:$0x3]
    %v1374 = vld [vmem:[%s6] sm:$0x3]
    %v1375 = vlaneseq
    %v1376 = vshrl.u32 %v1375, 7
    %v1377 = vsub.s32 0, %v1376
    %v1378 = vrot.slane %v1373, %v1377
    %1380 = vbcast.lane.b32.xlu0 %v1378, 256
    %v1381 = vpop.permute.xlu0 %1380
    %v1382 = vlaneseq
    %v1383 = vshrl.u32 %v1382, 7
    %v1384 = vsub.s32 1, %v1383
    %v1385 = vrot.slane %v1373, %v1384
    %1387 = vbcast.lane.b32.xlu0 %v1385, 256
    %v1388 = vpop.permute.xlu0 %1387
    %v1389 = vrot.slane %v1381, 4
    %v1390 = vadd.f32 %v1381, %v1389
    %v1391 = vrot.slane %v1390, 2
    %v1392 = vadd.f32 %v1390, %v1391
    %v1393 = vrot.slane %v1392, 1
    %v1394 = vadd.f32 %v1392, %v1393
    %v1395 = vrot.slane %v1388, 4
    %v1396 = vadd.f32 %v1388, %v1395
    %v1397 = vrot.slane %v1396, 2
    %v1398 = vadd.f32 %v1396, %v1397
    %v1399 = vrot.slane %v1398, 1
    %v1400 = vadd.f32 %v1398, %v1399
    %v1401 = vrcp.pop %v1394
    %v1402 = vrcp.pop %v1400
    %v1403 = vmul.f32 %v1381, %v1401
    %v1404 = vmul.f32 %v1388, %v1402
    %1405 = vxpose.xlu0.b32.start [1/16] %v1403, 128
    %1406 = vxpose.xlu0.b32.cont [2/16] 0.0, 128
    %1407 = vxpose.xlu0.b32.cont [3/16] 0.0, 128
    %1408 = vxpose.xlu0.b32.cont [4/16] 0.0, 128
    %1409 = vxpose.xlu0.b32.cont [5/16] 0.0, 128
    %1410 = vxpose.xlu0.b32.cont [6/16] 0.0, 128
    %1411 = vxpose.xlu0.b32.cont [7/16] 0.0, 128
    %1412 = vxpose.xlu0.b32.cont [8/16] 0.0, 128
    %1413 = vxpose.xlu0.b32.cont [9/16] 0.0, 128
    %1414 = vxpose.xlu0.b32.cont [10/16] 0.0, 128
    %1415 = vxpose.xlu0.b32.cont [11/16] 0.0, 128
    %1416 = vxpose.xlu0.b32.cont [12/16] 0.0, 128
    %1417 = vxpose.xlu0.b32.cont [13/16] 0.0, 128
    %1418 = vxpose.xlu0.b32.cont [14/16] 0.0, 128
    %1419 = vxpose.xlu0.b32.cont [15/16] 0.0, 128
    %1420 = vxpose.xlu0.b32.end [16/16] 0.0, 128
    %v1421 = vpop.trf.xlu0
    %v1422 = vpop.trf.xlu0
    %v1423 = vpop.trf.xlu0
    %v1424 = vpop.trf.xlu0
    %v1425 = vpop.trf.xlu0
    %v1426 = vpop.trf.xlu0
    %v1427 = vpop.trf.xlu0
    %v1428 = vpop.trf.xlu0
    %v1429 = vpop.trf.xlu0
    %v1430 = vpop.trf.xlu0
    %v1431 = vpop.trf.xlu0
    %v1432 = vpop.trf.xlu0
    %v1433 = vpop.trf.xlu0
    %v1434 = vpop.trf.xlu0
    %v1435 = vpop.trf.xlu0
    %v1436 = vpop.trf.xlu0
    %vm1437 = vcmask 64512
    %v1439 = vsel %vm1437, %v1421, 0
    %1441 = vmatprep.subr.mxu0 0.0
    %1442 = vmatpush1.msra.mxu0 0.0
    %1443 = vmatprep.subr.mxu0 0.0
    %1444 = vmatpush1.msra.mxu0 0.0
    %1445 = vmatprep.subr.mxu0 0.0
    %1446 = vmatpush1.msra.mxu0 0.0
    %1447 = vmatprep.subr.mxu0 0.0
    %1448 = vmatpush1.msra.mxu0 0.0
    %1449 = vmatprep.subr.mxu0 0.0
    %1450 = vmatpush1.msra.mxu0 0.0
    %1451 = vmatprep.subr.mxu0 0.0
    %1452 = vmatpush1.msra.mxu0 0.0
    %1453 = vmatprep.subr.mxu0 0.0
    %1454 = vmatpush1.msra.mxu0 0.0
    %1455 = vmatprep.subr.mxu0 0.0
    %1456 = vmatpush1.msra.mxu0 0.0
    %1457 = vmatprep.subr.mxu0 0.0
    %1458 = vmatpush1.msra.mxu0 0.0
    %1459 = vmatprep.subr.mxu0 0.0
    %1460 = vmatpush1.msra.mxu0 0.0
    %1461 = vmatprep.subr.mxu0 0.0
    %1462 = vmatpush1.msra.mxu0 0.0
    %1463 = vmatprep.subr.mxu0 0.0
    %1464 = vmatpush1.msra.mxu0 0.0
    %1465 = vmatprep.subr.mxu0 0.0
    %1466 = vmatpush1.msra.mxu0 0.0
    %1467 = vmatprep.subr.mxu0 0.0
    %1468 = vmatpush1.msra.mxu0 0.0
    %1469 = vmatprep.subr.mxu0 0.0
    %1470 = vmatpush1.msra.mxu0 0.0
    %1471 = vmatprep.subr.mxu0 0.0
    %1472 = vmatpush1.msra.mxu0 %v1365
    %1473 = vmatprep.subr.mxu0 0.0
    %1474 = vmatpush2.msra.mxu0 0.0
    %1475 = vmatprep.subr.mxu0 0.0
    %1476 = vmatpush2.msra.mxu0 0.0
    %1477 = vmatprep.subr.mxu0 0.0
    %1478 = vmatpush2.msra.mxu0 0.0
    %1479 = vmatprep.subr.mxu0 0.0
    %1480 = vmatpush2.msra.mxu0 0.0
    %1481 = vmatprep.subr.mxu0 0.0
    %1482 = vmatpush2.msra.mxu0 0.0
    %1483 = vmatprep.subr.mxu0 0.0
    %1484 = vmatpush2.msra.mxu0 0.0
    %1485 = vmatprep.subr.mxu0 0.0
    %1486 = vmatpush2.msra.mxu0 0.0
    %1487 = vmatprep.subr.mxu0 0.0
    %1488 = vmatpush2.msra.mxu0 0.0
    %1489 = vmatprep.subr.mxu0 0.0
    %1490 = vmatpush2.msra.mxu0 0.0
    %1491 = vmatprep.subr.mxu0 0.0
    %1492 = vmatpush2.msra.mxu0 0.0
    %1493 = vmatprep.subr.mxu0 0.0
    %1494 = vmatpush2.msra.mxu0 0.0
    %1495 = vmatprep.subr.mxu0 0.0
    %1496 = vmatpush2.msra.mxu0 0.0
    %1497 = vmatprep.subr.mxu0 0.0
    %1498 = vmatpush2.msra.mxu0 0.0
    %1499 = vmatprep.subr.mxu0 0.0
    %1500 = vmatpush2.msra.mxu0 0.0
    %1501 = vmatprep.subr.mxu0 0.0
    %1502 = vmatpush2.msra.mxu0 0.0
    %1503 = vmatprep.subr.mxu0 0.0
    %1504 = vmatpush2.msra.mxu0 0.0
    %1505 = vmatprep.mubr.f32.mxu0 0.0
    %1506 = vmatmul.mubr.f32.gmra.mxu0 %v1439
    %v1507 = vpop.f32.mrf.mxu0
    %v1508 = vadd.f32 0.0, %v1507
    %v1509 = vpop.f32.mrf.mxu0
    %1510 = vdwg.mxu0
    %1511 = vxpose.xlu0.b32.start [1/16] %v1404, 128
    %1512 = vxpose.xlu0.b32.cont [2/16] 0.0, 128
    %1513 = vxpose.xlu0.b32.cont [3/16] 0.0, 128
    %1514 = vxpose.xlu0.b32.cont [4/16] 0.0, 128
    %1515 = vxpose.xlu0.b32.cont [5/16] 0.0, 128
    %1516 = vxpose.xlu0.b32.cont [6/16] 0.0, 128
    %1517 = vxpose.xlu0.b32.cont [7/16] 0.0, 128
    %1518 = vxpose.xlu0.b32.cont [8/16] 0.0, 128
    %1519 = vxpose.xlu0.b32.cont [9/16] 0.0, 128
    %1520 = vxpose.xlu0.b32.cont [10/16] 0.0, 128
    %1521 = vxpose.xlu0.b32.cont [11/16] 0.0, 128
    %1522 = vxpose.xlu0.b32.cont [12/16] 0.0, 128
    %1523 = vxpose.xlu0.b32.cont [13/16] 0.0, 128
    %1524 = vxpose.xlu0.b32.cont [14/16] 0.0, 128
    %1525 = vxpose.xlu0.b32.cont [15/16] 0.0, 128
    %1526 = vxpose.xlu0.b32.end [16/16] 0.0, 128
    %v1527 = vpop.trf.xlu0
    %v1528 = vpop.trf.xlu0
    %v1529 = vpop.trf.xlu0
    %v1530 = vpop.trf.xlu0
    %v1531 = vpop.trf.xlu0
    %v1532 = vpop.trf.xlu0
    %v1533 = vpop.trf.xlu0
    %v1534 = vpop.trf.xlu0
    %v1535 = vpop.trf.xlu0
    %v1536 = vpop.trf.xlu0
    %v1537 = vpop.trf.xlu0
    %v1538 = vpop.trf.xlu0
    %v1539 = vpop.trf.xlu0
    %v1540 = vpop.trf.xlu0
    %v1541 = vpop.trf.xlu0
    %v1542 = vpop.trf.xlu0
    %v1544 = vsel %vm1437, %v1527, 0
    %1546 = vmatprep.subr.mxu0 0.0
    %1547 = vmatpush1.msra.mxu0 0.0
    %1548 = vmatprep.subr.mxu0 0.0
    %1549 = vmatpush1.msra.mxu0 0.0
    %1550 = vmatprep.subr.mxu0 0.0
    %1551 = vmatpush1.msra.mxu0 0.0
    %1552 = vmatprep.subr.mxu0 0.0
    %1553 = vmatpush1.msra.mxu0 0.0
    %1554 = vmatprep.subr.mxu0 0.0
    %1555 = vmatpush1.msra.mxu0 0.0
    %1556 = vmatprep.subr.mxu0 0.0
    %1557 = vmatpush1.msra.mxu0 0.0
    %1558 = vmatprep.subr.mxu0 0.0
    %1559 = vmatpush1.msra.mxu0 0.0
    %1560 = vmatprep.subr.mxu0 0.0
    %1561 = vmatpush1.msra.mxu0 0.0
    %1562 = vmatprep.subr.mxu0 0.0
    %1563 = vmatpush1.msra.mxu0 0.0
    %1564 = vmatprep.subr.mxu0 0.0
    %1565 = vmatpush1.msra.mxu0 0.0
    %1566 = vmatprep.subr.mxu0 0.0
    %1567 = vmatpush1.msra.mxu0 0.0
    %1568 = vmatprep.subr.mxu0 0.0
    %1569 = vmatpush1.msra.mxu0 0.0
    %1570 = vmatprep.subr.mxu0 0.0
    %1571 = vmatpush1.msra.mxu0 0.0
    %1572 = vmatprep.subr.mxu0 0.0
    %1573 = vmatpush1.msra.mxu0 0.0
    %1574 = vmatprep.subr.mxu0 0.0
    %1575 = vmatpush1.msra.mxu0 0.0
    %1576 = vmatprep.subr.mxu0 0.0
    %1577 = vmatpush1.msra.mxu0 %v1370
    %1578 = vmatprep.subr.mxu0 0.0
    %1579 = vmatpush2.msra.mxu0 0.0
    %1580 = vmatprep.subr.mxu0 0.0
    %1581 = vmatpush2.msra.mxu0 0.0
    %1582 = vmatprep.subr.mxu0 0.0
    %1583 = vmatpush2.msra.mxu0 0.0
    %1584 = vmatprep.subr.mxu0 0.0
    %1585 = vmatpush2.msra.mxu0 0.0
    %1586 = vmatprep.subr.mxu0 0.0
    %1587 = vmatpush2.msra.mxu0 0.0
    %1588 = vmatprep.subr.mxu0 0.0
    %1589 = vmatpush2.msra.mxu0 0.0
    %1590 = vmatprep.subr.mxu0 0.0
    %1591 = vmatpush2.msra.mxu0 0.0
    %1592 = vmatprep.subr.mxu0 0.0
    %1593 = vmatpush2.msra.mxu0 0.0
    %1594 = vmatprep.subr.mxu0 0.0
    %1595 = vmatpush2.msra.mxu0 0.0
    %1596 = vmatprep.subr.mxu0 0.0
    %1597 = vmatpush2.msra.mxu0 0.0
    %1598 = vmatprep.subr.mxu0 0.0
    %1599 = vmatpush2.msra.mxu0 0.0
    %1600 = vmatprep.subr.mxu0 0.0
    %1601 = vmatpush2.msra.mxu0 0.0
    %1602 = vmatprep.subr.mxu0 0.0
    %1603 = vmatpush2.msra.mxu0 0.0
    %1604 = vmatprep.subr.mxu0 0.0
    %1605 = vmatpush2.msra.mxu0 0.0
    %1606 = vmatprep.subr.mxu0 0.0
    %1607 = vmatpush2.msra.mxu0 0.0
    %1608 = vmatprep.subr.mxu0 0.0
    %1609 = vmatpush2.msra.mxu0 0.0
    %1610 = vmatprep.mubr.f32.mxu0 0.0
    %1611 = vmatmul.mubr.f32.gmra.mxu0 %v1544
    %v1612 = vpop.f32.mrf.mxu0
    %v1613 = vadd.f32 0.0, %v1612
    %v1614 = vpop.f32.mrf.mxu0
    %1615 = vdwg.mxu0
    %v1616 = vmul.f32 %v1508, %v1508
    %v1617 = vmul.f32 %v1613, %v1613
    %vm1618 = vcmask 405504
    %v1619 = vsel %vm1618, %v1616, 0.0
    %1620 = vadd.xlane.f32.xlu0 %v1619
    %v1621 = vpop.xlane.xlu0 %1620
    %v1622 = vsel %vm1618, %v1617, 0.0
    %1623 = vadd.xlane.f32.xlu0 %v1622
    %v1624 = vpop.xlane.xlu0 %1623
    %v1625 = vrsqrt.pop %v1621
    %v1626 = vmul.f32 %v1621, %v1625
    %vm1627 = vcmp.eq.f32.partialorder %v1621, inf
    %v1628 = vsel %vm1627, %v1621, %v1626
    %vm1629 = vcmp.eq.f32.partialorder %v1621, 0.0
    %v1630 = vand.u32 %v1621, 2147483648
    %v1631 = vsel %vm1629, %v1630, %v1628
    %v1632 = vrsqrt.pop %v1624
    %v1633 = vmul.f32 %v1624, %v1632
    %vm1634 = vcmp.eq.f32.partialorder %v1624, inf
    %v1635 = vsel %vm1634, %v1624, %v1633
    %vm1636 = vcmp.eq.f32.partialorder %v1624, 0.0
    %v1637 = vand.u32 %v1624, 2147483648
    %v1638 = vsel %vm1636, %v1637, %v1635
    %v1639 = vadd.f32 %v1621, 1.0
    %v1640 = vadd.f32 %v1624, 1.0
    %v1641 = vrcp.pop %v1639
    %v1642 = vrcp.pop %v1640
    %v1643 = vmul.f32 %v1631, %v1641
    %v1644 = vmul.f32 %v1638, %v1642
    %v1645 = vmul.f32 %v1508, %v1643
    %v1646 = vmul.f32 %v1613, %v1644
    %vm1647 = vcmask 408576
    %v1649 = vsel %vm1647, %v1365, 0
    %v1652 = vsel %vm1647, %v1645, 0
    %1654 = vmatprep.subr.mxu0 0.0
    %1655 = vmatpush1.xpose.msra.mxu0 0.0
    %1656 = vmatprep.subr.mxu0 0.0
    %1657 = vmatpush1.xpose.msra.mxu0 0.0
    %1658 = vmatprep.subr.mxu0 0.0
    %1659 = vmatpush1.xpose.msra.mxu0 0.0
    %1660 = vmatprep.subr.mxu0 0.0
    %1661 = vmatpush1.xpose.msra.mxu0 0.0
    %1662 = vmatprep.subr.mxu0 0.0
    %1663 = vmatpush1.xpose.msra.mxu0 0.0
    %1664 = vmatprep.subr.mxu0 0.0
    %1665 = vmatpush1.xpose.msra.mxu0 0.0
    %1666 = vmatprep.subr.mxu0 0.0
    %1667 = vmatpush1.xpose.msra.mxu0 0.0
    %1668 = vmatprep.subr.mxu0 0.0
    %1669 = vmatpush1.xpose.msra.mxu0 0.0
    %1670 = vmatprep.subr.mxu0 0.0
    %1671 = vmatpush1.xpose.msra.mxu0 0.0
    %1672 = vmatprep.subr.mxu0 0.0
    %1673 = vmatpush1.xpose.msra.mxu0 0.0
    %1674 = vmatprep.subr.mxu0 0.0
    %1675 = vmatpush1.xpose.msra.mxu0 0.0
    %1676 = vmatprep.subr.mxu0 0.0
    %1677 = vmatpush1.xpose.msra.mxu0 0.0
    %1678 = vmatprep.subr.mxu0 0.0
    %1679 = vmatpush1.xpose.msra.mxu0 0.0
    %1680 = vmatprep.subr.mxu0 0.0
    %1681 = vmatpush1.xpose.msra.mxu0 0.0
    %1682 = vmatprep.subr.mxu0 0.0
    %1683 = vmatpush1.xpose.msra.mxu0 0.0
    %1684 = vmatprep.subr.mxu0 0.0
    %1685 = vmatpush1.xpose.msra.mxu0 %v1652
    %1686 = vmatprep.subr.mxu0 0.0
    %1687 = vmatpush2.xpose.msra.mxu0 0.0
    %1688 = vmatprep.subr.mxu0 0.0
    %1689 = vmatpush2.xpose.msra.mxu0 0.0
    %1690 = vmatprep.subr.mxu0 0.0
    %1691 = vmatpush2.xpose.msra.mxu0 0.0
    %1692 = vmatprep.subr.mxu0 0.0
    %1693 = vmatpush2.xpose.msra.mxu0 0.0
    %1694 = vmatprep.subr.mxu0 0.0
    %1695 = vmatpush2.xpose.msra.mxu0 0.0
    %1696 = vmatprep.subr.mxu0 0.0
    %1697 = vmatpush2.xpose.msra.mxu0 0.0
    %1698 = vmatprep.subr.mxu0 0.0
    %1699 = vmatpush2.xpose.msra.mxu0 0.0
    %1700 = vmatprep.subr.mxu0 0.0
    %1701 = vmatpush2.xpose.msra.mxu0 0.0
    %1702 = vmatprep.subr.mxu0 0.0
    %1703 = vmatpush2.xpose.msra.mxu0 0.0
    %1704 = vmatprep.subr.mxu0 0.0
    %1705 = vmatpush2.xpose.msra.mxu0 0.0
    %1706 = vmatprep.subr.mxu0 0.0
    %1707 = vmatpush2.xpose.msra.mxu0 0.0
    %1708 = vmatprep.subr.mxu0 0.0
    %1709 = vmatpush2.xpose.msra.mxu0 0.0
    %1710 = vmatprep.subr.mxu0 0.0
    %1711 = vmatpush2.xpose.msra.mxu0 0.0
    %1712 = vmatprep.subr.mxu0 0.0
    %1713 = vmatpush2.xpose.msra.mxu0 0.0
    %1714 = vmatprep.subr.mxu0 0.0
    %1715 = vmatpush2.xpose.msra.mxu0 0.0
    %1716 = vmatprep.subr.mxu0 0.0
    %1717 = vmatpush2.xpose.msra.mxu0 0.0
    %1718 = vmatprep.mubr.f32.mxu0 0.0
    %1719 = vmatmul.mubr.f32.gmra.mxu0 %v1649
    %v1720 = vpop.f32.mrf.mxu0
    %v1721 = vadd.f32 0.0, %v1720
    %v1722 = vpop.f32.mrf.mxu0
    %1723 = vdwg.mxu0
    %v1725 = vsel %vm1647, %v1370, 0
    %v1728 = vsel %vm1647, %v1646, 0
    %1730 = vmatprep.subr.mxu0 0.0
    %1731 = vmatpush1.xpose.msra.mxu0 0.0
    %1732 = vmatprep.subr.mxu0 0.0
    %1733 = vmatpush1.xpose.msra.mxu0 0.0
    %1734 = vmatprep.subr.mxu0 0.0
    %1735 = vmatpush1.xpose.msra.mxu0 0.0
    %1736 = vmatprep.subr.mxu0 0.0
    %1737 = vmatpush1.xpose.msra.mxu0 0.0
    %1738 = vmatprep.subr.mxu0 0.0
    %1739 = vmatpush1.xpose.msra.mxu0 0.0
    %1740 = vmatprep.subr.mxu0 0.0
    %1741 = vmatpush1.xpose.msra.mxu0 0.0
    %1742 = vmatprep.subr.mxu0 0.0
    %1743 = vmatpush1.xpose.msra.mxu0 0.0
    %1744 = vmatprep.subr.mxu0 0.0
    %1745 = vmatpush1.xpose.msra.mxu0 0.0
    %1746 = vmatprep.subr.mxu0 0.0
    %1747 = vmatpush1.xpose.msra.mxu0 0.0
    %1748 = vmatprep.subr.mxu0 0.0
    %1749 = vmatpush1.xpose.msra.mxu0 0.0
    %1750 = vmatprep.subr.mxu0 0.0
    %1751 = vmatpush1.xpose.msra.mxu0 0.0
    %1752 = vmatprep.subr.mxu0 0.0
    %1753 = vmatpush1.xpose.msra.mxu0 0.0
    %1754 = vmatprep.subr.mxu0 0.0
    %1755 = vmatpush1.xpose.msra.mxu0 0.0
    %1756 = vmatprep.subr.mxu0 0.0
    %1757 = vmatpush1.xpose.msra.mxu0 0.0
    %1758 = vmatprep.subr.mxu0 0.0
    %1759 = vmatpush1.xpose.msra.mxu0 0.0
    %1760 = vmatprep.subr.mxu0 0.0
    %1761 = vmatpush1.xpose.msra.mxu0 %v1728
    %1762 = vmatprep.subr.mxu0 0.0
    %1763 = vmatpush2.xpose.msra.mxu0 0.0
    %1764 = vmatprep.subr.mxu0 0.0
    %1765 = vmatpush2.xpose.msra.mxu0 0.0
    %1766 = vmatprep.subr.mxu0 0.0
    %1767 = vmatpush2.xpose.msra.mxu0 0.0
    %1768 = vmatprep.subr.mxu0 0.0
    %1769 = vmatpush2.xpose.msra.mxu0 0.0
    %1770 = vmatprep.subr.mxu0 0.0
    %1771 = vmatpush2.xpose.msra.mxu0 0.0
    %1772 = vmatprep.subr.mxu0 0.0
    %1773 = vmatpush2.xpose.msra.mxu0 0.0
    %1774 = vmatprep.subr.mxu0 0.0
    %1775 = vmatpush2.xpose.msra.mxu0 0.0
    %1776 = vmatprep.subr.mxu0 0.0
    %1777 = vmatpush2.xpose.msra.mxu0 0.0
    %1778 = vmatprep.subr.mxu0 0.0
    %1779 = vmatpush2.xpose.msra.mxu0 0.0
    %1780 = vmatprep.subr.mxu0 0.0
    %1781 = vmatpush2.xpose.msra.mxu0 0.0
    %1782 = vmatprep.subr.mxu0 0.0
    %1783 = vmatpush2.xpose.msra.mxu0 0.0
    %1784 = vmatprep.subr.mxu0 0.0
    %1785 = vmatpush2.xpose.msra.mxu0 0.0
    %1786 = vmatprep.subr.mxu0 0.0
    %1787 = vmatpush2.xpose.msra.mxu0 0.0
    %1788 = vmatprep.subr.mxu0 0.0
    %1789 = vmatpush2.xpose.msra.mxu0 0.0
    %1790 = vmatprep.subr.mxu0 0.0
    %1791 = vmatpush2.xpose.msra.mxu0 0.0
    %1792 = vmatprep.subr.mxu0 0.0
    %1793 = vmatpush2.xpose.msra.mxu0 0.0
    %1794 = vmatprep.mubr.f32.mxu0 0.0
    %1795 = vmatmul.mubr.f32.gmra.mxu0 %v1725
    %v1796 = vpop.f32.mrf.mxu0
    %v1797 = vadd.f32 0.0, %v1796
    %v1798 = vpop.f32.mrf.mxu0
    %1799 = vdwg.mxu0
    %v1800 = vmul.f32 %v1721, 1.442695
    %v1801 = vpow.pop %v1800
    %v1802 = vmul.f32 %v1797, 1.442695
    %v1803 = vpow.pop %v1802
    %v1804 = vmul.f32 %v1801, %v1381
    %v1805 = vmul.f32 %v1803, %v1388
    %vm1806 = vcmask 39936
    %v1807 = vsel %vm1806, %v1804, 0.0
    %v1808 = vrot.slane %v1807, 4
    %v1809 = vadd.f32 %v1807, %v1808
    %v1810 = vrot.slane %v1809, 2
    %v1811 = vadd.f32 %v1809, %v1810
    %v1812 = vrot.slane %v1811, 1
    %v1813 = vadd.f32 %v1811, %v1812
    %v1814 = vsel %vm1806, %v1805, 0.0
    %v1815 = vrot.slane %v1814, 4
    %v1816 = vadd.f32 %v1814, %v1815
    %v1817 = vrot.slane %v1816, 2
    %v1818 = vadd.f32 %v1816, %v1817
    %v1819 = vrot.slane %v1818, 1
    %v1820 = vadd.f32 %v1818, %v1819
    %v1821 = vrcp.pop %v1813
    %v1822 = vrcp.pop %v1820
    %v1823 = vmul.f32 %v1804, %v1821
    %v1824 = vmul.f32 %v1805, %v1822
    %1825 = vxpose.xlu0.b32.start [1/16] %v1823, 128
    %1826 = vxpose.xlu0.b32.cont [2/16] 0.0, 128
    %1827 = vxpose.xlu0.b32.cont [3/16] 0.0, 128
    %1828 = vxpose.xlu0.b32.cont [4/16] 0.0, 128
    %1829 = vxpose.xlu0.b32.cont [5/16] 0.0, 128
    %1830 = vxpose.xlu0.b32.cont [6/16] 0.0, 128
    %1831 = vxpose.xlu0.b32.cont [7/16] 0.0, 128
    %1832 = vxpose.xlu0.b32.cont [8/16] 0.0, 128
    %1833 = vxpose.xlu0.b32.cont [9/16] 0.0, 128
    %1834 = vxpose.xlu0.b32.cont [10/16] 0.0, 128
    %1835 = vxpose.xlu0.b32.cont [11/16] 0.0, 128
    %1836 = vxpose.xlu0.b32.cont [12/16] 0.0, 128
    %1837 = vxpose.xlu0.b32.cont [13/16] 0.0, 128
    %1838 = vxpose.xlu0.b32.cont [14/16] 0.0, 128
    %1839 = vxpose.xlu0.b32.cont [15/16] 0.0, 128
    %1840 = vxpose.xlu0.b32.end [16/16] 0.0, 128
    %v1841 = vpop.trf.xlu0
    %v1842 = vpop.trf.xlu0
    %v1843 = vpop.trf.xlu0
    %v1844 = vpop.trf.xlu0
    %v1845 = vpop.trf.xlu0
    %v1846 = vpop.trf.xlu0
    %v1847 = vpop.trf.xlu0
    %v1848 = vpop.trf.xlu0
    %v1849 = vpop.trf.xlu0
    %v1850 = vpop.trf.xlu0
    %v1851 = vpop.trf.xlu0
    %v1852 = vpop.trf.xlu0
    %v1853 = vpop.trf.xlu0
    %v1854 = vpop.trf.xlu0
    %v1855 = vpop.trf.xlu0
    %v1856 = vpop.trf.xlu0
    %v1858 = vsel %vm1437, %v1841, 0
    %1860 = vmatprep.subr.mxu0 0.0
    %1861 = vmatpush1.msra.mxu0 0.0
    %1862 = vmatprep.subr.mxu0 0.0
    %1863 = vmatpush1.msra.mxu0 0.0
    %1864 = vmatprep.subr.mxu0 0.0
    %1865 = vmatpush1.msra.mxu0 0.0
    %1866 = vmatprep.subr.mxu0 0.0
    %1867 = vmatpush1.msra.mxu0 0.0
    %1868 = vmatprep.subr.mxu0 0.0
    %1869 = vmatpush1.msra.mxu0 0.0
    %1870 = vmatprep.subr.mxu0 0.0
    %1871 = vmatpush1.msra.mxu0 0.0
    %1872 = vmatprep.subr.mxu0 0.0
    %1873 = vmatpush1.msra.mxu0 0.0
    %1874 = vmatprep.subr.mxu0 0.0
    %1875 = vmatpush1.msra.mxu0 0.0
    %1876 = vmatprep.subr.mxu0 0.0
    %1877 = vmatpush1.msra.mxu0 0.0
    %1878 = vmatprep.subr.mxu0 0.0
    %1879 = vmatpush1.msra.mxu0 0.0
    %1880 = vmatprep.subr.mxu0 0.0
    %1881 = vmatpush1.msra.mxu0 0.0
    %1882 = vmatprep.subr.mxu0 0.0
    %1883 = vmatpush1.msra.mxu0 0.0
    %1884 = vmatprep.subr.mxu0 0.0
    %1885 = vmatpush1.msra.mxu0 0.0
    %1886 = vmatprep.subr.mxu0 0.0
    %1887 = vmatpush1.msra.mxu0 0.0
    %1888 = vmatprep.subr.mxu0 0.0
    %1889 = vmatpush1.msra.mxu0 0.0
    %1890 = vmatprep.subr.mxu0 0.0
    %1891 = vmatpush1.msra.mxu0 %v1365
    %1892 = vmatprep.subr.mxu0 0.0
    %1893 = vmatpush2.msra.mxu0 0.0
    %1894 = vmatprep.subr.mxu0 0.0
    %1895 = vmatpush2.msra.mxu0 0.0
    %1896 = vmatprep.subr.mxu0 0.0
    %1897 = vmatpush2.msra.mxu0 0.0
    %1898 = vmatprep.subr.mxu0 0.0
    %1899 = vmatpush2.msra.mxu0 0.0
    %1900 = vmatprep.subr.mxu0 0.0
    %1901 = vmatpush2.msra.mxu0 0.0
    %1902 = vmatprep.subr.mxu0 0.0
    %1903 = vmatpush2.msra.mxu0 0.0
    %1904 = vmatprep.subr.mxu0 0.0
    %1905 = vmatpush2.msra.mxu0 0.0
    %1906 = vmatprep.subr.mxu0 0.0
    %1907 = vmatpush2.msra.mxu0 0.0
    %1908 = vmatprep.subr.mxu0 0.0
    %1909 = vmatpush2.msra.mxu0 0.0
    %1910 = vmatprep.subr.mxu0 0.0
    %1911 = vmatpush2.msra.mxu0 0.0
    %1912 = vmatprep.subr.mxu0 0.0
    %1913 = vmatpush2.msra.mxu0 0.0
    %1914 = vmatprep.subr.mxu0 0.0
    %1915 = vmatpush2.msra.mxu0 0.0
    %1916 = vmatprep.subr.mxu0 0.0
    %1917 = vmatpush2.msra.mxu0 0.0
    %1918 = vmatprep.subr.mxu0 0.0
    %1919 = vmatpush2.msra.mxu0 0.0
    %1920 = vmatprep.subr.mxu0 0.0
    %1921 = vmatpush2.msra.mxu0 0.0
    %1922 = vmatprep.subr.mxu0 0.0
    %1923 = vmatpush2.msra.mxu0 0.0
    %1924 = vmatprep.mubr.f32.mxu0 0.0
    %1925 = vmatmul.mubr.f32.gmra.mxu0 %v1858
    %v1926 = vpop.f32.mrf.mxu0
    %v1927 = vadd.f32 0.0, %v1926
    %v1928 = vpop.f32.mrf.mxu0
    %1929 = vdwg.mxu0
    %1930 = vxpose.xlu0.b32.start [1/16] %v1824, 128
    %1931 = vxpose.xlu0.b32.cont [2/16] 0.0, 128
    %1932 = vxpose.xlu0.b32.cont [3/16] 0.0, 128
    %1933 = vxpose.xlu0.b32.cont [4/16] 0.0, 128
    %1934 = vxpose.xlu0.b32.cont [5/16] 0.0, 128
    %1935 = vxpose.xlu0.b32.cont [6/16] 0.0, 128
    %1936 = vxpose.xlu0.b32.cont [7/16] 0.0, 128
    %1937 = vxpose.xlu0.b32.cont [8/16] 0.0, 128
    %1938 = vxpose.xlu0.b32.cont [9/16] 0.0, 128
    %1939 = vxpose.xlu0.b32.cont [10/16] 0.0, 128
    %1940 = vxpose.xlu0.b32.cont [11/16] 0.0, 128
    %1941 = vxpose.xlu0.b32.cont [12/16] 0.0, 128
    %1942 = vxpose.xlu0.b32.cont [13/16] 0.0, 128
    %1943 = vxpose.xlu0.b32.cont [14/16] 0.0, 128
    %1944 = vxpose.xlu0.b32.cont [15/16] 0.0, 128
    %1945 = vxpose.xlu0.b32.end [16/16] 0.0, 128
    %v1946 = vpop.trf.xlu0
    %v1947 = vpop.trf.xlu0
    %v1948 = vpop.trf.xlu0
    %v1949 = vpop.trf.xlu0
    %v1950 = vpop.trf.xlu0
    %v1951 = vpop.trf.xlu0
    %v1952 = vpop.trf.xlu0
    %v1953 = vpop.trf.xlu0
    %v1954 = vpop.trf.xlu0
    %v1955 = vpop.trf.xlu0
    %v1956 = vpop.trf.xlu0
    %v1957 = vpop.trf.xlu0
    %v1958 = vpop.trf.xlu0
    %v1959 = vpop.trf.xlu0
    %v1960 = vpop.trf.xlu0
    %v1961 = vpop.trf.xlu0
    %v1963 = vsel %vm1437, %v1946, 0
    %1965 = vmatprep.subr.mxu0 0.0
    %1966 = vmatpush1.msra.mxu0 0.0
    %1967 = vmatprep.subr.mxu0 0.0
    %1968 = vmatpush1.msra.mxu0 0.0
    %1969 = vmatprep.subr.mxu0 0.0
    %1970 = vmatpush1.msra.mxu0 0.0
    %1971 = vmatprep.subr.mxu0 0.0
    %1972 = vmatpush1.msra.mxu0 0.0
    %1973 = vmatprep.subr.mxu0 0.0
    %1974 = vmatpush1.msra.mxu0 0.0
    %1975 = vmatprep.subr.mxu0 0.0
    %1976 = vmatpush1.msra.mxu0 0.0
    %1977 = vmatprep.subr.mxu0 0.0
    %1978 = vmatpush1.msra.mxu0 0.0
    %1979 = vmatprep.subr.mxu0 0.0
    %1980 = vmatpush1.msra.mxu0 0.0
    %1981 = vmatprep.subr.mxu0 0.0
    %1982 = vmatpush1.msra.mxu0 0.0
    %1983 = vmatprep.subr.mxu0 0.0
    %1984 = vmatpush1.msra.mxu0 0.0
    %1985 = vmatprep.subr.mxu0 0.0
    %1986 = vmatpush1.msra.mxu0 0.0
    %1987 = vmatprep.subr.mxu0 0.0
    %1988 = vmatpush1.msra.mxu0 0.0
    %1989 = vmatprep.subr.mxu0 0.0
    %1990 = vmatpush1.msra.mxu0 0.0
    %1991 = vmatprep.subr.mxu0 0.0
    %1992 = vmatpush1.msra.mxu0 0.0
    %1993 = vmatprep.subr.mxu0 0.0
    %1994 = vmatpush1.msra.mxu0 0.0
    %1995 = vmatprep.subr.mxu0 0.0
    %1996 = vmatpush1.msra.mxu0 %v1370
    %1997 = vmatprep.subr.mxu0 0.0
    %1998 = vmatpush2.msra.mxu0 0.0
    %1999 = vmatprep.subr.mxu0 0.0
    %2000 = vmatpush2.msra.mxu0 0.0
    %2001 = vmatprep.subr.mxu0 0.0
    %2002 = vmatpush2.msra.mxu0 0.0
    %2003 = vmatprep.subr.mxu0 0.0
    %2004 = vmatpush2.msra.mxu0 0.0
    %2005 = vmatprep.subr.mxu0 0.0
    %2006 = vmatpush2.msra.mxu0 0.0
    %2007 = vmatprep.subr.mxu0 0.0
    %2008 = vmatpush2.msra.mxu0 0.0
    %2009 = vmatprep.subr.mxu0 0.0
    %2010 = vmatpush2.msra.mxu0 0.0
    %2011 = vmatprep.subr.mxu0 0.0
    %2012 = vmatpush2.msra.mxu0 0.0
    %2013 = vmatprep.subr.mxu0 0.0
    %2014 = vmatpush2.msra.mxu0 0.0
    %2015 = vmatprep.subr.mxu0 0.0
    %2016 = vmatpush2.msra.mxu0 0.0
    %2017 = vmatprep.subr.mxu0 0.0
    %2018 = vmatpush2.msra.mxu0 0.0
    %2019 = vmatprep.subr.mxu0 0.0
    %2020 = vmatpush2.msra.mxu0 0.0
    %2021 = vmatprep.subr.mxu0 0.0
    %2022 = vmatpush2.msra.mxu0 0.0
    %2023 = vmatprep.subr.mxu0 0.0
    %2024 = vmatpush2.msra.mxu0 0.0
    %2025 = vmatprep.subr.mxu0 0.0
    %2026 = vmatpush2.msra.mxu0 0.0
    %2027 = vmatprep.subr.mxu0 0.0
    %2028 = vmatpush2.msra.mxu0 0.0
    %2029 = vmatprep.mubr.f32.mxu0 0.0
    %2030 = vmatmul.mubr.f32.gmra.mxu0 %v1963
    %v2031 = vpop.f32.mrf.mxu0
    %v2032 = vadd.f32 0.0, %v2031
    %v2033 = vpop.f32.mrf.mxu0
    %2034 = vdwg.mxu0
    %v2035 = vmul.f32 %v1927, %v1927
    %v2036 = vmul.f32 %v2032, %v2032
    %v2037 = vsel %vm1618, %v2035, 0.0
    %2038 = vadd.xlane.f32.xlu0 %v2037
    %v2039 = vpop.xlane.xlu0 %2038
    %v2040 = vsel %vm1618, %v2036, 0.0
    %2041 = vadd.xlane.f32.xlu0 %v2040
    %v2042 = vpop.xlane.xlu0 %2041
    %v2043 = vrsqrt.pop %v2039
    %v2044 = vmul.f32 %v2039, %v2043
    %vm2045 = vcmp.eq.f32.partialorder %v2039, inf
    %v2046 = vsel %vm2045, %v2039, %v2044
    %vm2047 = vcmp.eq.f32.partialorder %v2039, 0.0
    %v2048 = vand.u32 %v2039, 2147483648
    %v2049 = vsel %vm2047, %v2048, %v2046
    %v2050 = vrsqrt.pop %v2042
    %v2051 = vmul.f32 %v2042, %v2050
    %vm2052 = vcmp.eq.f32.partialorder %v2042, inf
    %v2053 = vsel %vm2052, %v2042, %v2051
    %vm2054 = vcmp.eq.f32.partialorder %v2042, 0.0
    %v2055 = vand.u32 %v2042, 2147483648
    %v2056 = vsel %vm2054, %v2055, %v2053
    %v2057 = vadd.f32 %v2039, 1.0
    %v2058 = vadd.f32 %v2042, 1.0
    %v2059 = vrcp.pop %v2057
    %v2060 = vrcp.pop %v2058
    %v2061 = vmul.f32 %v2049, %v2059
    %v2062 = vmul.f32 %v2056, %v2060
    %v2063 = vmul.f32 %v1927, %v2061
    %v2064 = vmul.f32 %v2032, %v2062
    %v2066 = vsel %vm1647, %v2063, 0
    %2068 = vmatprep.subr.mxu0 0.0
    %2069 = vmatpush1.xpose.msra.mxu0 0.0
    %2070 = vmatprep.subr.mxu0 0.0
    %2071 = vmatpush1.xpose.msra.mxu0 0.0
    %2072 = vmatprep.subr.mxu0 0.0
    %2073 = vmatpush1.xpose.msra.mxu0 0.0
    %2074 = vmatprep.subr.mxu0 0.0
    %2075 = vmatpush1.xpose.msra.mxu0 0.0
    %2076 = vmatprep.subr.mxu0 0.0
    %2077 = vmatpush1.xpose.msra.mxu0 0.0
    %2078 = vmatprep.subr.mxu0 0.0
    %2079 = vmatpush1.xpose.msra.mxu0 0.0
    %2080 = vmatprep.subr.mxu0 0.0
    %2081 = vmatpush1.xpose.msra.mxu0 0.0
    %2082 = vmatprep.subr.mxu0 0.0
    %2083 = vmatpush1.xpose.msra.mxu0 0.0
    %2084 = vmatprep.subr.mxu0 0.0
    %2085 = vmatpush1.xpose.msra.mxu0 0.0
    %2086 = vmatprep.subr.mxu0 0.0
    %2087 = vmatpush1.xpose.msra.mxu0 0.0
    %2088 = vmatprep.subr.mxu0 0.0
    %2089 = vmatpush1.xpose.msra.mxu0 0.0
    %2090 = vmatprep.subr.mxu0 0.0
    %2091 = vmatpush1.xpose.msra.mxu0 0.0
    %2092 = vmatprep.subr.mxu0 0.0
    %2093 = vmatpush1.xpose.msra.mxu0 0.0
    %2094 = vmatprep.subr.mxu0 0.0
    %2095 = vmatpush1.xpose.msra.mxu0 0.0
    %2096 = vmatprep.subr.mxu0 0.0
    %2097 = vmatpush1.xpose.msra.mxu0 0.0
    %2098 = vmatprep.subr.mxu0 0.0
    %2099 = vmatpush1.xpose.msra.mxu0 %v2066
    %2100 = vmatprep.subr.mxu0 0.0
    %2101 = vmatpush2.xpose.msra.mxu0 0.0
    %2102 = vmatprep.subr.mxu0 0.0
    %2103 = vmatpush2.xpose.msra.mxu0 0.0
    %2104 = vmatprep.subr.mxu0 0.0
    %2105 = vmatpush2.xpose.msra.mxu0 0.0
    %2106 = vmatprep.subr.mxu0 0.0
    %2107 = vmatpush2.xpose.msra.mxu0 0.0
    %2108 = vmatprep.subr.mxu0 0.0
    %2109 = vmatpush2.xpose.msra.mxu0 0.0
    %2110 = vmatprep.subr.mxu0 0.0
    %2111 = vmatpush2.xpose.msra.mxu0 0.0
    %2112 = vmatprep.subr.mxu0 0.0
    %2113 = vmatpush2.xpose.msra.mxu0 0.0
    %2114 = vmatprep.subr.mxu0 0.0
    %2115 = vmatpush2.xpose.msra.mxu0 0.0
    %2116 = vmatprep.subr.mxu0 0.0
    %2117 = vmatpush2.xpose.msra.mxu0 0.0
    %2118 = vmatprep.subr.mxu0 0.0
    %2119 = vmatpush2.xpose.msra.mxu0 0.0
    %2120 = vmatprep.subr.mxu0 0.0
    %2121 = vmatpush2.xpose.msra.mxu0 0.0
    %2122 = vmatprep.subr.mxu0 0.0
    %2123 = vmatpush2.xpose.msra.mxu0 0.0
    %2124 = vmatprep.subr.mxu0 0.0
    %2125 = vmatpush2.xpose.msra.mxu0 0.0
    %2126 = vmatprep.subr.mxu0 0.0
    %2127 = vmatpush2.xpose.msra.mxu0 0.0
    %2128 = vmatprep.subr.mxu0 0.0
    %2129 = vmatpush2.xpose.msra.mxu0 0.0
    %2130 = vmatprep.subr.mxu0 0.0
    %2131 = vmatpush2.xpose.msra.mxu0 0.0
    %2132 = vmatprep.mubr.f32.mxu0 0.0
    %2133 = vmatmul.mubr.f32.gmra.mxu0 %v1649
    %v2134 = vpop.f32.mrf.mxu0
    %v2135 = vadd.f32 0.0, %v2134
    %v2136 = vpop.f32.mrf.mxu0
    %2137 = vdwg.mxu0
    %v2139 = vsel %vm1647, %v2064, 0
    %2141 = vmatprep.subr.mxu0 0.0
    %2142 = vmatpush1.xpose.msra.mxu0 0.0
    %2143 = vmatprep.subr.mxu0 0.0
    %2144 = vmatpush1.xpose.msra.mxu0 0.0
    %2145 = vmatprep.subr.mxu0 0.0
    %2146 = vmatpush1.xpose.msra.mxu0 0.0
    %2147 = vmatprep.subr.mxu0 0.0
    %2148 = vmatpush1.xpose.msra.mxu0 0.0
    %2149 = vmatprep.subr.mxu0 0.0
    %2150 = vmatpush1.xpose.msra.mxu0 0.0
    %2151 = vmatprep.subr.mxu0 0.0
    %2152 = vmatpush1.xpose.msra.mxu0 0.0
    %2153 = vmatprep.subr.mxu0 0.0
    %2154 = vmatpush1.xpose.msra.mxu0 0.0
    %2155 = vmatprep.subr.mxu0 0.0
    %2156 = vmatpush1.xpose.msra.mxu0 0.0
    %2157 = vmatprep.subr.mxu0 0.0
    %2158 = vmatpush1.xpose.msra.mxu0 0.0
    %2159 = vmatprep.subr.mxu0 0.0
    %2160 = vmatpush1.xpose.msra.mxu0 0.0
    %2161 = vmatprep.subr.mxu0 0.0
    %2162 = vmatpush1.xpose.msra.mxu0 0.0
    %2163 = vmatprep.subr.mxu0 0.0
    %2164 = vmatpush1.xpose.msra.mxu0 0.0
    %2165 = vmatprep.subr.mxu0 0.0
    %2166 = vmatpush1.xpose.msra.mxu0 0.0
    %2167 = vmatprep.subr.mxu0 0.0
    %2168 = vmatpush1.xpose.msra.mxu0 0.0
    %2169 = vmatprep.subr.mxu0 0.0
    %2170 = vmatpush1.xpose.msra.mxu0 0.0
    %2171 = vmatprep.subr.mxu0 0.0
    %2172 = vmatpush1.xpose.msra.mxu0 %v2139
    %2173 = vmatprep.subr.mxu0 0.0
    %2174 = vmatpush2.xpose.msra.mxu0 0.0
    %2175 = vmatprep.subr.mxu0 0.0
    %2176 = vmatpush2.xpose.msra.mxu0 0.0
    %2177 = vmatprep.subr.mxu0 0.0
    %2178 = vmatpush2.xpose.msra.mxu0 0.0
    %2179 = vmatprep.subr.mxu0 0.0
    %2180 = vmatpush2.xpose.msra.mxu0 0.0
    %2181 = vmatprep.subr.mxu0 0.0
    %2182 = vmatpush2.xpose.msra.mxu0 0.0
    %2183 = vmatprep.subr.mxu0 0.0
    %2184 = vmatpush2.xpose.msra.mxu0 0.0
    %2185 = vmatprep.subr.mxu0 0.0
    %2186 = vmatpush2.xpose.msra.mxu0 0.0
    %2187 = vmatprep.subr.mxu0 0.0
    %2188 = vmatpush2.xpose.msra.mxu0 0.0
    %2189 = vmatprep.subr.mxu0 0.0
    %2190 = vmatpush2.xpose.msra.mxu0 0.0
    %2191 = vmatprep.subr.mxu0 0.0
    %2192 = vmatpush2.xpose.msra.mxu0 0.0
    %2193 = vmatprep.subr.mxu0 0.0
    %2194 = vmatpush2.xpose.msra.mxu0 0.0
    %2195 = vmatprep.subr.mxu0 0.0
    %2196 = vmatpush2.xpose.msra.mxu0 0.0
    %2197 = vmatprep.subr.mxu0 0.0
    %2198 = vmatpush2.xpose.msra.mxu0 0.0
    %2199 = vmatprep.subr.mxu0 0.0
    %2200 = vmatpush2.xpose.msra.mxu0 0.0
    %2201 = vmatprep.subr.mxu0 0.0
    %2202 = vmatpush2.xpose.msra.mxu0 0.0
    %2203 = vmatprep.subr.mxu0 0.0
    %2204 = vmatpush2.xpose.msra.mxu0 0.0
    %2205 = vmatprep.mubr.f32.mxu0 0.0
    %2206 = vmatmul.mubr.f32.gmra.mxu0 %v1725
    %v2207 = vpop.f32.mrf.mxu0
    %v2208 = vadd.f32 0.0, %v2207
    %v2209 = vpop.f32.mrf.mxu0
    %2210 = vdwg.mxu0
    %v2211 = vmul.f32 %v2135, 1.442695
    %v2212 = vpow.pop %v2211
    %v2213 = vmul.f32 %v2208, 1.442695
    %v2214 = vpow.pop %v2213
    %v2215 = vmul.f32 %v2212, %v1381
    %v2216 = vmul.f32 %v2214, %v1388
    %v2217 = vsel %vm1806, %v2215, 0.0
    %v2218 = vrot.slane %v2217, 4
    %v2219 = vadd.f32 %v2217, %v2218
    %v2220 = vrot.slane %v2219, 2
    %v2221 = vadd.f32 %v2219, %v2220
    %v2222 = vrot.slane %v2221, 1
    %v2223 = vadd.f32 %v2221, %v2222
    %v2224 = vsel %vm1806, %v2216, 0.0
    %v2225 = vrot.slane %v2224, 4
    %v2226 = vadd.f32 %v2224, %v2225
    %v2227 = vrot.slane %v2226, 2
    %v2228 = vadd.f32 %v2226, %v2227
    %v2229 = vrot.slane %v2228, 1
    %v2230 = vadd.f32 %v2228, %v2229
    %v2231 = vrcp.pop %v2223
    %v2232 = vrcp.pop %v2230
    %v2233 = vmul.f32 %v2215, %v2231
    %v2234 = vmul.f32 %v2216, %v2232
    %2235 = vxpose.xlu0.b32.start [1/16] %v2233, 128
    %2236 = vxpose.xlu0.b32.cont [2/16] 0.0, 128
    %2237 = vxpose.xlu0.b32.cont [3/16] 0.0, 128
    %2238 = vxpose.xlu0.b32.cont [4/16] 0.0, 128
    %2239 = vxpose.xlu0.b32.cont [5/16] 0.0, 128
    %2240 = vxpose.xlu0.b32.cont [6/16] 0.0, 128
    %2241 = vxpose.xlu0.b32.cont [7/16] 0.0, 128
    %2242 = vxpose.xlu0.b32.cont [8/16] 0.0, 128
    %2243 = vxpose.xlu0.b32.cont [9/16] 0.0, 128
    %2244 = vxpose.xlu0.b32.cont [10/16] 0.0, 128
    %2245 = vxpose.xlu0.b32.cont [11/16] 0.0, 128
    %2246 = vxpose.xlu0.b32.cont [12/16] 0.0, 128
    %2247 = vxpose.xlu0.b32.cont [13/16] 0.0, 128
    %2248 = vxpose.xlu0.b32.cont [14/16] 0.0, 128
    %2249 = vxpose.xlu0.b32.cont [15/16] 0.0, 128
    %2250 = vxpose.xlu0.b32.end [16/16] 0.0, 128
    %v2251 = vpop.trf.xlu0
    %v2252 = vpop.trf.xlu0
    %v2253 = vpop.trf.xlu0
    %v2254 = vpop.trf.xlu0
    %v2255 = vpop.trf.xlu0
    %v2256 = vpop.trf.xlu0
    %v2257 = vpop.trf.xlu0
    %v2258 = vpop.trf.xlu0
    %v2259 = vpop.trf.xlu0
    %v2260 = vpop.trf.xlu0
    %v2261 = vpop.trf.xlu0
    %v2262 = vpop.trf.xlu0
    %v2263 = vpop.trf.xlu0
    %v2264 = vpop.trf.xlu0
    %v2265 = vpop.trf.xlu0
    %v2266 = vpop.trf.xlu0
    %v2268 = vsel %vm1437, %v2251, 0
    %2270 = vmatprep.subr.mxu0 0.0
    %2271 = vmatpush1.msra.mxu0 0.0
    %2272 = vmatprep.subr.mxu0 0.0
    %2273 = vmatpush1.msra.mxu0 0.0
    %2274 = vmatprep.subr.mxu0 0.0
    %2275 = vmatpush1.msra.mxu0 0.0
    %2276 = vmatprep.subr.mxu0 0.0
    %2277 = vmatpush1.msra.mxu0 0.0
    %2278 = vmatprep.subr.mxu0 0.0
    %2279 = vmatpush1.msra.mxu0 0.0
    %2280 = vmatprep.subr.mxu0 0.0
    %2281 = vmatpush1.msra.mxu0 0.0
    %2282 = vmatprep.subr.mxu0 0.0
    %2283 = vmatpush1.msra.mxu0 0.0
    %2284 = vmatprep.subr.mxu0 0.0
    %2285 = vmatpush1.msra.mxu0 0.0
    %2286 = vmatprep.subr.mxu0 0.0
    %2287 = vmatpush1.msra.mxu0 0.0
    %2288 = vmatprep.subr.mxu0 0.0
    %2289 = vmatpush1.msra.mxu0 0.0
    %2290 = vmatprep.subr.mxu0 0.0
    %2291 = vmatpush1.msra.mxu0 0.0
    %2292 = vmatprep.subr.mxu0 0.0
    %2293 = vmatpush1.msra.mxu0 0.0
    %2294 = vmatprep.subr.mxu0 0.0
    %2295 = vmatpush1.msra.mxu0 0.0
    %2296 = vmatprep.subr.mxu0 0.0
    %2297 = vmatpush1.msra.mxu0 0.0
    %2298 = vmatprep.subr.mxu0 0.0
    %2299 = vmatpush1.msra.mxu0 0.0
    %2300 = vmatprep.subr.mxu0 0.0
    %2301 = vmatpush1.msra.mxu0 %v1365
    %2302 = vmatprep.subr.mxu0 0.0
    %2303 = vmatpush2.msra.mxu0 0.0
    %2304 = vmatprep.subr.mxu0 0.0
    %2305 = vmatpush2.msra.mxu0 0.0
    %2306 = vmatprep.subr.mxu0 0.0
    %2307 = vmatpush2.msra.mxu0 0.0
    %2308 = vmatprep.subr.mxu0 0.0
    %2309 = vmatpush2.msra.mxu0 0.0
    %2310 = vmatprep.subr.mxu0 0.0
    %2311 = vmatpush2.msra.mxu0 0.0
    %2312 = vmatprep.subr.mxu0 0.0
    %2313 = vmatpush2.msra.mxu0 0.0
    %2314 = vmatprep.subr.mxu0 0.0
    %2315 = vmatpush2.msra.mxu0 0.0
    %2316 = vmatprep.subr.mxu0 0.0
    %2317 = vmatpush2.msra.mxu0 0.0
    %2318 = vmatprep.subr.mxu0 0.0
    %2319 = vmatpush2.msra.mxu0 0.0
    %2320 = vmatprep.subr.mxu0 0.0
    %2321 = vmatpush2.msra.mxu0 0.0
    %2322 = vmatprep.subr.mxu0 0.0
    %2323 = vmatpush2.msra.mxu0 0.0
    %2324 = vmatprep.subr.mxu0 0.0
    %2325 = vmatpush2.msra.mxu0 0.0
    %2326 = vmatprep.subr.mxu0 0.0
    %2327 = vmatpush2.msra.mxu0 0.0
    %2328 = vmatprep.subr.mxu0 0.0
    %2329 = vmatpush2.msra.mxu0 0.0
    %2330 = vmatprep.subr.mxu0 0.0
    %2331 = vmatpush2.msra.mxu0 0.0
    %2332 = vmatprep.subr.mxu0 0.0
    %2333 = vmatpush2.msra.mxu0 0.0
    %2334 = vmatprep.mubr.f32.mxu0 0.0
    %2335 = vmatmul.mubr.f32.gmra.mxu0 %v2268
    %v2336 = vpop.f32.mrf.mxu0
    %v2337 = vadd.f32 0.0, %v2336
    %v2338 = vpop.f32.mrf.mxu0
    %2339 = vdwg.mxu0
    %2340 = vxpose.xlu0.b32.start [1/16] %v2234, 128
    %2341 = vxpose.xlu0.b32.cont [2/16] 0.0, 128
    %2342 = vxpose.xlu0.b32.cont [3/16] 0.0, 128
    %2343 = vxpose.xlu0.b32.cont [4/16] 0.0, 128
    %2344 = vxpose.xlu0.b32.cont [5/16] 0.0, 128
    %2345 = vxpose.xlu0.b32.cont [6/16] 0.0, 128
    %2346 = vxpose.xlu0.b32.cont [7/16] 0.0, 128
    %2347 = vxpose.xlu0.b32.cont [8/16] 0.0, 128
    %2348 = vxpose.xlu0.b32.cont [9/16] 0.0, 128
    %2349 = vxpose.xlu0.b32.cont [10/16] 0.0, 128
    %2350 = vxpose.xlu0.b32.cont [11/16] 0.0, 128
    %2351 = vxpose.xlu0.b32.cont [12/16] 0.0, 128
    %2352 = vxpose.xlu0.b32.cont [13/16] 0.0, 128
    %2353 = vxpose.xlu0.b32.cont [14/16] 0.0, 128
    %2354 = vxpose.xlu0.b32.cont [15/16] 0.0, 128
    %2355 = vxpose.xlu0.b32.end [16/16] 0.0, 128
    %v2356 = vpop.trf.xlu0
    %v2357 = vpop.trf.xlu0
    %v2358 = vpop.trf.xlu0
    %v2359 = vpop.trf.xlu0
    %v2360 = vpop.trf.xlu0
    %v2361 = vpop.trf.xlu0
    %v2362 = vpop.trf.xlu0
    %v2363 = vpop.trf.xlu0
    %v2364 = vpop.trf.xlu0
    %v2365 = vpop.trf.xlu0
    %v2366 = vpop.trf.xlu0
    %v2367 = vpop.trf.xlu0
    %v2368 = vpop.trf.xlu0
    %v2369 = vpop.trf.xlu0
    %v2370 = vpop.trf.xlu0
    %v2371 = vpop.trf.xlu0
    %v2373 = vsel %vm1437, %v2356, 0
    %2375 = vmatprep.subr.mxu0 0.0
    %2376 = vmatpush1.msra.mxu0 0.0
    %2377 = vmatprep.subr.mxu0 0.0
    %2378 = vmatpush1.msra.mxu0 0.0
    %2379 = vmatprep.subr.mxu0 0.0
    %2380 = vmatpush1.msra.mxu0 0.0
    %2381 = vmatprep.subr.mxu0 0.0
    %2382 = vmatpush1.msra.mxu0 0.0
    %2383 = vmatprep.subr.mxu0 0.0
    %2384 = vmatpush1.msra.mxu0 0.0
    %2385 = vmatprep.subr.mxu0 0.0
    %2386 = vmatpush1.msra.mxu0 0.0
    %2387 = vmatprep.subr.mxu0 0.0
    %2388 = vmatpush1.msra.mxu0 0.0
    %2389 = vmatprep.subr.mxu0 0.0
    %2390 = vmatpush1.msra.mxu0 0.0
    %2391 = vmatprep.subr.mxu0 0.0
    %2392 = vmatpush1.msra.mxu0 0.0
    %2393 = vmatprep.subr.mxu0 0.0
    %2394 = vmatpush1.msra.mxu0 0.0
    %2395 = vmatprep.subr.mxu0 0.0
    %2396 = vmatpush1.msra.mxu0 0.0
    %2397 = vmatprep.subr.mxu0 0.0
    %2398 = vmatpush1.msra.mxu0 0.0
    %2399 = vmatprep.subr.mxu0 0.0
    %2400 = vmatpush1.msra.mxu0 0.0
    %2401 = vmatprep.subr.mxu0 0.0
    %2402 = vmatpush1.msra.mxu0 0.0
    %2403 = vmatprep.subr.mxu0 0.0
    %2404 = vmatpush1.msra.mxu0 0.0
    %2405 = vmatprep.subr.mxu0 0.0
    %2406 = vmatpush1.msra.mxu0 %v1370
    %2407 = vmatprep.subr.mxu0 0.0
    %2408 = vmatpush2.msra.mxu0 0.0
    %2409 = vmatprep.subr.mxu0 0.0
    %2410 = vmatpush2.msra.mxu0 0.0
    %2411 = vmatprep.subr.mxu0 0.0
    %2412 = vmatpush2.msra.mxu0 0.0
    %2413 = vmatprep.subr.mxu0 0.0
    %2414 = vmatpush2.msra.mxu0 0.0
    %2415 = vmatprep.subr.mxu0 0.0
    %2416 = vmatpush2.msra.mxu0 0.0
    %2417 = vmatprep.subr.mxu0 0.0
    %2418 = vmatpush2.msra.mxu0 0.0
    %2419 = vmatprep.subr.mxu0 0.0
    %2420 = vmatpush2.msra.mxu0 0.0
    %2421 = vmatprep.subr.mxu0 0.0
    %2422 = vmatpush2.msra.mxu0 0.0
    %2423 = vmatprep.subr.mxu0 0.0
    %2424 = vmatpush2.msra.mxu0 0.0
    %2425 = vmatprep.subr.mxu0 0.0
    %2426 = vmatpush2.msra.mxu0 0.0
    %2427 = vmatprep.subr.mxu0 0.0
    %2428 = vmatpush2.msra.mxu0 0.0
    %2429 = vmatprep.subr.mxu0 0.0
    %2430 = vmatpush2.msra.mxu0 0.0
    %2431 = vmatprep.subr.mxu0 0.0
    %2432 = vmatpush2.msra.mxu0 0.0
    %2433 = vmatprep.subr.mxu0 0.0
    %2434 = vmatpush2.msra.mxu0 0.0
    %2435 = vmatprep.subr.mxu0 0.0
    %2436 = vmatpush2.msra.mxu0 0.0
    %2437 = vmatprep.subr.mxu0 0.0
    %2438 = vmatpush2.msra.mxu0 0.0
    %2439 = vmatprep.mubr.f32.mxu0 0.0
    %2440 = vmatmul.mubr.f32.gmra.mxu0 %v2373
    %v2441 = vpop.f32.mrf.mxu0
    %v2442 = vadd.f32 0.0, %v2441
    %v2443 = vpop.f32.mrf.mxu0
    %2444 = vdwg.mxu0
    %v2445 = vmul.f32 %v2337, %v2337
    %v2446 = vmul.f32 %v2442, %v2442
    %v2447 = vsel %vm1618, %v2445, 0.0
    %2448 = vadd.xlane.f32.xlu0 %v2447
    %v2449 = vpop.xlane.xlu0 %2448
    %v2450 = vsel %vm1618, %v2446, 0.0
    %2451 = vadd.xlane.f32.xlu0 %v2450
    %v2452 = vpop.xlane.xlu0 %2451
    %v2453 = vrsqrt.pop %v2449
    %v2454 = vmul.f32 %v2449, %v2453
    %vm2455 = vcmp.eq.f32.partialorder %v2449, inf
    %v2456 = vsel %vm2455, %v2449, %v2454
    %vm2457 = vcmp.eq.f32.partialorder %v2449, 0.0
    %v2458 = vand.u32 %v2449, 2147483648
    %v2459 = vsel %vm2457, %v2458, %v2456
    %v2460 = vrsqrt.pop %v2452
    %v2461 = vmul.f32 %v2452, %v2460
    %vm2462 = vcmp.eq.f32.partialorder %v2452, inf
    %v2463 = vsel %vm2462, %v2452, %v2461
    %vm2464 = vcmp.eq.f32.partialorder %v2452, 0.0
    %v2465 = vand.u32 %v2452, 2147483648
    %v2466 = vsel %vm2464, %v2465, %v2463
    %v2467 = vadd.f32 %v2449, 1.0
    %v2468 = vadd.f32 %v2452, 1.0
    %v2469 = vrcp.pop %v2467
    %v2470 = vrcp.pop %v2468
    %v2471 = vmul.f32 %v2459, %v2469
    %v2472 = vmul.f32 %v2466, %v2470
    %v2473 = vmul.f32 %v2337, %v2471
    %v2474 = vmul.f32 %v2442, %v2472
    %v2475 = vmul.f32 %v2473, %v2473
    %v2476 = vmul.f32 %v2474, %v2474
    %v2477 = vsel %vm1618, %v2475, 0.0
    %2478 = vadd.xlane.f32.xlu0 %v2477
    %v2479 = vpop.xlane.xlu0 %2478
    %v2480 = vsel %vm1618, %v2476, 0.0
    %2481 = vadd.xlane.f32.xlu0 %v2480
    %v2482 = vpop.xlane.xlu0 %2481
    %v2483 = vrsqrt.pop %v2479
    %v2484 = vmul.f32 %v2479, %v2483
    %vm2485 = vcmp.eq.f32.partialorder %v2479, inf
    %v2486 = vsel %vm2485, %v2479, %v2484
    %vm2487 = vcmp.eq.f32.partialorder %v2479, 0.0
    %v2488 = vand.u32 %v2479, 2147483648
    %v2489 = vsel %vm2487, %v2488, %v2486
    %v2490 = vrsqrt.pop %v2482
    %v2491 = vmul.f32 %v2482, %v2490
    %vm2492 = vcmp.eq.f32.partialorder %v2482, inf
    %v2493 = vsel %vm2492, %v2482, %v2491
    %vm2494 = vcmp.eq.f32.partialorder %v2482, 0.0
    %v2495 = vand.u32 %v2482, 2147483648
    %v2496 = vsel %vm2494, %v2495, %v2493
    %v2497 = vsub.f32 0.9, %v2489
    %v2498 = vsub.f32 0.9, %v2496
    %v2499 = vmax.f32 %v2497, 0.0
    %v2500 = vmax.f32 %v2498, 0.0
    %v2501 = vmul.f32 %v2499, %v2499
    %v2502 = vmul.f32 %v2500, %v2500
    %v2503 = vsub.f32 %v2489, 0.1
    %v2504 = vsub.f32 %v2496, 0.1
    %v2505 = vmax.f32 %v2503, 0.0
    %v2506 = vmax.f32 %v2504, 0.0
    %v2507 = vmul.f32 %v2505, %v2505
    %v2508 = vmul.f32 %v2506, %v2506
    %v2511 = vlaneseq
    %v2512 = vand.u32 %v2511, 127
    %v2513 = vlaneseq
    %v2514 = vshrl.u32 %v2513, 7
    %v2515 = vsub.s32 %v2512, %v2514
    %v2516 = vrot.slane %v2501, %v2515
    %v2517 = vlaneseq
    %v2518 = vshrl.u32 %v2517, 7
    %v2519 = vsub.s32 %v2512, %v2518
    %v2520 = vrot.slane %v2502, %v2519
    %vm2521 = vcmask 1041409
    %v2522 = vsel %vm2521, %v2520, %v2516
    %v2524 = vmul.f32 %v1374, %v2522
    %v2525 = vsub.f32 1.0, %v1374
    %v2526 = vmul.f32 %v2525, 0.5
    %v2529 = vlaneseq
    %v2530 = vshrl.u32 %v2529, 7
    %v2531 = vsub.s32 %v2512, %v2530
    %v2532 = vrot.slane %v2507, %v2531
    %v2533 = vlaneseq
    %v2534 = vshrl.u32 %v2533, 7
    %v2535 = vsub.s32 %v2512, %v2534
    %v2536 = vrot.slane %v2508, %v2535
    %v2537 = vsel %vm2521, %v2536, %v2532
    %v2539 = vmul.f32 %v2526, %v2537
    %v2540 = vadd.f32 %v2524, %v2539
    %vm2541 = vcmask 33792
    %v2542 = vsel %vm2541, %v2540, 0.0
    %2543 = vadd.xlane.f32.xlu0 %v2542
    %v2544 = vpop.xlane.xlu0 %2543
    %vm2545 = vcmask 1041408
    %v2546 = vsel %vm2545, %v2544, 0.0
    %v2547 = vrot.slane %v2546, 4
    %v2548 = vadd.f32 %v2546, %v2547
    %v2549 = vrot.slane %v2548, 2
    %v2550 = vadd.f32 %v2548, %v2549
    %v2551 = vrot.slane %v2550, 1
    %v2552 = vadd.f32 %v2550, %v2551
    %v2553 = vmul.f32 %v2552, 0.5
    %vm2554 = vcmask 0
    %2555 = vst.msk [vmem:[#allocation3] sm:$0x1] %vm2554, %v2553
    // Predicated region
    $region30: #{lstm_capsule_forward.1} parent=1 // pred_check
      _
    $region31: #{lstm_capsule_forward.1} parent=1 // pred_check_branch
      %2557 = sbr.rel (0) target = $region33
    $region32: #{lstm_capsule_forward.1} parent=1 // pred_region
      %s2559 = ssub.s32 16, 16
      %2560 = vsyncadd [#allocation4], %s2559
      %s2562 = sshll.u32 [#allocation3], 4
      %s2563 = int_to_ptr.vmem [resolvable:$true] %s2562
      %2565 = dma.vmem_to_hbm [thread:$0]  %s2563, 16, %s7, [#allocation4]
    $region33: #{lstm_capsule_forward.1} parent=1 // pred_fallthru
      _
    // Predicated region
    $region34: #{lstm_capsule_forward.1} parent=1 // pred_check
      _
    $region35: #{lstm_capsule_forward.1} parent=1 // pred_check_branch
      %2567 = sbr.rel (0) target = $region37
    $region36: #{lstm_capsule_forward.1} parent=1 // pred_region
      %2568 = dma.done [#allocation4], 16
    $region37: #{lstm_capsule_forward.1} parent=1 // pred_fallthru
      _
    %2569 = vsyncpa [#allocation4], 1

</llo_original>
